<compile_context>
chip_gen: v7x
topology: tpu7x:2x2x1
jax: 0.10.0
libtpu: 0.0.40
codegen_flags: <defaults>
</compile_context>

<pallas_src>
import functools

import numpy as np
import jax
import jax.numpy as jnp
from jax import lax
from jax.experimental import pallas as pl
from jax.experimental.pallas import tpu as pltpu


# ----------------------------------------------------------------------------
# Pallas kernel: recurrent part of one bidirectional LSTM layer
# ----------------------------------------------------------------------------

def _pick_time_chunk(T, cap=32):
    """Largest divisor of T that is <= cap (amortizes per-grid-step overhead)."""
    tc = 1
    for c in range(1, min(T, cap) + 1):
        if T % c == 0:
            tc = c
    return tc


def _make_bilstm_kernel(TC, H):
    """Kernel over grid (direction, time_chunk).

    Refs (after squeezing the direction block dim):
      gx_ref  : (TC, B, 4H)  precomputed x@W_ih^T + b for this chunk/direction
      whh_ref : (H, 4H)      recurrent weights for this direction
      out_ref : (TC, B, H)   per-timestep hidden outputs for this chunk
      hN_ref  : (B, H)       final hidden state for this direction
      cN_ref  : (B, H)       final cell state for this direction
      h_sc,c_sc: (B, H)      state carried across chunks (VMEM scratch)
    """

    def kernel(gx_ref, whh_ref, out_ref, hN_ref, cN_ref, h_sc, c_sc):
        d = pl.program_id(0)        # 0 = forward, 1 = backward
        k = pl.program_id(1)        # chunk counter along the sequential axis

        @pl.when(k == 0)
        def _():
            h_sc[...] = jnp.zeros_like(h_sc)
            c_sc[...] = jnp.zeros_like(c_sc)

        whh = whh_ref[...]          # (H, 4H), kept resident in vregs per chunk
        sign = 1 - 2 * d            # +1 fwd, -1 bwd
        base = d * (TC - 1)         # 0 fwd, TC-1 bwd

        def step(jj, carry):
            h, c = carry
            # forward: j = jj ; backward: j = TC-1-jj  (branch free)
            j = base + sign * jj
            gates = gx_ref[j] + jnp.dot(h, whh,
                                        preferred_element_type=jnp.float32)
            # PyTorch gate order: i, f, g, o
            i_g = jax.nn.sigmoid(gates[:, 0 * H:1 * H])
            f_g = jax.nn.sigmoid(gates[:, 1 * H:2 * H])
            g_g = jnp.tanh(gates[:, 2 * H:3 * H])
            o_g = jax.nn.sigmoid(gates[:, 3 * H:4 * H])
            c_new = f_g * c + i_g * g_g
            h_new = o_g * jnp.tanh(c_new)
            out_ref[j] = h_new
            return h_new, c_new

        h_fin, c_fin = lax.fori_loop(
            0, TC, step, (h_sc[...], c_sc[...]), unroll=True)

        h_sc[...] = h_fin
        c_sc[...] = c_fin

        # Only the last chunk writes the final states (avoids redundant stores).
        @pl.when(k == pl.num_programs(1) - 1)
        def _():
            hN_ref[...] = h_fin
            cN_ref[...] = c_fin

    return kernel


def bilstm_layer(gx_all, w_hh_t, *, time_chunk=None):
    """Run the recurrent part of one bidirectional LSTM layer.

    gx_all : (2, T, B, 4H) f32 — hoisted input projections (dir 0=fwd, 1=bwd),
             indexed by the *original* time index t (no flipping).
    w_hh_t : (2, H, 4H)  f32 — transposed recurrent weights per direction.

    Returns (out_all (2,T,B,H), h_n (2,B,H), c_n (2,B,H)).
    """
    _, T, B, G = gx_all.shape
    H = G // 4
    TC = _pick_time_chunk(T) if time_chunk is None else time_chunk
    nchunks = T // TC
    assert nchunks * TC == T

    kernel = _make_bilstm_kernel(TC, H)

    # Backward direction walks the chunks from the end; realized in index_map
    # (same DMA, different block index) instead of jnp.flip in HBM.
    def seq_map(d, k):
        kk = d * (nchunks - 1) + (1 - 2 * d) * k
        return (d, kk, 0, 0)

    grid_spec = pltpu.PrefetchScalarGridSpec(
        num_scalar_prefetch=0,
        grid=(2, nchunks),
        in_specs=[
            pl.BlockSpec((None, TC, B, G), seq_map),
            pl.BlockSpec((None, H, G), lambda d, k: (d, 0, 0)),
        ],
        out_specs=[
            pl.BlockSpec((None, TC, B, H), seq_map),
            pl.BlockSpec((None, B, H), lambda d, k: (d, 0, 0)),
            pl.BlockSpec((None, B, H), lambda d, k: (d, 0, 0)),
        ],
        scratch_shapes=[
            pltpu.VMEM((B, H), jnp.float32),   # h state carried across chunks
            pltpu.VMEM((B, H), jnp.float32),   # c state carried across chunks
        ],
    )

    out_shapes = (
        jax.ShapeDtypeStruct((2, T, B, H), jnp.float32),
        jax.ShapeDtypeStruct((2, B, H), jnp.float32),
        jax.ShapeDtypeStruct((2, B, H), jnp.float32),
    )

    return pl.pallas_call(
        kernel,
        out_shape=out_shapes,
        grid_spec=grid_spec,
        compiler_params=pltpu.CompilerParams(
            # direction axis is independent (2 TCs on v7x); time is sequential
            dimension_semantics=("parallel", "arbitrary")),
    )(gx_all.astype(jnp.float32), w_hh_t.astype(jnp.float32))


# ----------------------------------------------------------------------------
# Parameters (nn.LSTM layout) and one-time packing
# ----------------------------------------------------------------------------

def init_encoder_params(key, input_dim, hidden_dim, num_layers):
    """U(-k, k) init mirroring nn.LSTM parameter shapes, k = 1/sqrt(H)."""
    params = {}
    k = 1.0 / np.sqrt(hidden_dim)
    for layer in range(num_layers):
        in_dim = input_dim if layer == 0 else 2 * hidden_dim
        for d in range(2):  # 0 = forward, 1 = backward
            key, k1, k2, k3, k4 = jax.random.split(key, 5)
            params[(layer, d)] = dict(
                w_ih=jax.random.uniform(k1, (4 * hidden_dim, in_dim),
                                        minval=-k, maxval=k, dtype=jnp.float32),
                w_hh=jax.random.uniform(k2, (4 * hidden_dim, hidden_dim),
                                        minval=-k, maxval=k, dtype=jnp.float32),
                b_ih=jax.random.uniform(k3, (4 * hidden_dim,),
                                        minval=-k, maxval=k, dtype=jnp.float32),
                b_hh=jax.random.uniform(k4, (4 * hidden_dim,),
                                        minval=-k, maxval=k, dtype=jnp.float32),
            )
    return params


def prepare_encoder_params(params, num_layers):
    """One-time pre-transpose / stack so the forward pass does no per-call
    weight transposes."""
    prepared = []
    for layer in range(num_layers):
        w_ih_t = jnp.stack([params[(layer, d)]["w_ih"].T for d in range(2)])  # (2, In, 4H)
        w_hh_t = jnp.stack([params[(layer, d)]["w_hh"].T for d in range(2)])  # (2, H, 4H)
        bias = jnp.stack([params[(layer, d)]["b_ih"] + params[(layer, d)]["b_hh"]
                          for d in range(2)])                                  # (2, 4H)
        prepared.append(dict(w_ih_t=w_ih_t, w_hh_t=w_hh_t, bias=bias))
    return prepared


# ----------------------------------------------------------------------------
# Encoder forward (Pallas path)
# ----------------------------------------------------------------------------

@jax.jit
def encoder_forward(source, prepared):
    """Forward pass of Encoder: outputs, (h_n, c_n)."""
    H = prepared[0]["w_hh_t"].shape[1]
    hp = lax.Precision.HIGHEST

    out_fwd = out_bwd = None
    h_list, c_list = [], []
    for layer, p in enumerate(prepared):
        if layer == 0:
            # Hoisted input projection for all timesteps, both directions.
            gx = jnp.einsum("tbi,dig->dtbg", source, p["w_ih_t"], precision=hp)
        else:
            # Split the projection instead of materializing concat([fwd, bwd]).
            gx = (jnp.einsum("tbh,dhg->dtbg", out_fwd, p["w_ih_t"][:, :H], precision=hp)
                  + jnp.einsum("tbh,dhg->dtbg", out_bwd, p["w_ih_t"][:, H:], precision=hp))
        gx = gx + p["bias"][:, None, None, :]

        out_all, h_n, c_n = bilstm_layer(gx, p["w_hh_t"])
        out_fwd, out_bwd = out_all[0], out_all[1]
        h_list.append(h_n)
        c_list.append(c_n)

    outputs = jnp.concatenate([out_fwd, out_bwd], axis=-1)   # (T, B, 2H)
    h_n = jnp.concatenate(h_list, axis=0)                    # (2*L, B, H)
    c_n = jnp.concatenate(c_list, axis=0)
    return outputs, (h_n, c_n)


# ----------------------------------------------------------------------------
# Pure-JAX reference (mirrors PyTorch nn.LSTM semantics) for verification
# ----------------------------------------------------------------------------

def encoder_reference(source, params, num_layers, hidden_dim):
    H = hidden_dim
    hp = lax.Precision.HIGHEST

    def run_dir(x, p, reverse):
        w_ih, w_hh = p["w_ih"], p["w_hh"]
        b = p["b_ih"] + p["b_hh"]
        B = x.shape[1]
        xs = jnp.flip(x, axis=0) if reverse else x

        def step(carry, xt):
            h, c = carry
            g = (jnp.dot(xt, w_ih.T, precision=hp)
                 + jnp.dot(h, w_hh.T, precision=hp) + b)
            i = jax.nn.sigmoid(g[:, :H])
            f = jax.nn.sigmoid(g[:, H:2 * H])
            gg = jnp.tanh(g[:, 2 * H:3 * H])
            o = jax.nn.sigmoid(g[:, 3 * H:])
            c = f * c + i * gg
            h = o * jnp.tanh(c)
            return (h, c), h

        init = (jnp.zeros((B, H), jnp.float32), jnp.zeros((B, H), jnp.float32))
        (h_n, c_n), out = lax.scan(step, init, xs)
        if reverse:
            out = jnp.flip(out, axis=0)
        return out, h_n, c_n

    x = source
    hs, cs = [], []
    for layer in range(num_layers):
        outs = []
        for d in range(2):
            o, h, c = run_dir(x, params[(layer, d)], d == 1)
            outs.append(o)
            hs.append(h)
            cs.append(c)
        x = jnp.concatenate(outs, axis=-1)
    return x, (jnp.stack(hs, axis=0), jnp.stack(cs, axis=0))


# ----------------------------------------------------------------------------
# Main
# ----------------------------------------------------------------------------

if __name__ == "__main__":
    T, B = 8, 2
    input_dim, hidden_dim, num_layers = 16, 32, 2

    key = jax.random.PRNGKey(0)
    key, k_src = jax.random.split(key)
    source = jax.random.normal(k_src, (T, B, input_dim), dtype=jnp.float32)

    params = init_encoder_params(key, input_dim, hidden_dim, num_layers)
    prepared = prepare_encoder_params(params, num_layers)

    outputs, (h_n, c_n) = encoder_forward(source, prepared)
    outputs, h_n, c_n = map(jax.block_until_ready, (outputs, h_n, c_n))

    assert outputs.shape == (T, B, 2 * hidden_dim)
    assert h_n.shape == (num_layers * 2, B, hidden_dim)
    assert c_n.shape == (num_layers * 2, B, hidden_dim)
    assert bool(jnp.all(jnp.isfinite(outputs)))

    # Numerical check against a pure-JAX LSTM reference (PyTorch semantics).
    ref_out, (ref_h, ref_c) = encoder_reference(source, params, num_layers, hidden_dim)
    assert bool(jnp.allclose(outputs, ref_out, atol=3e-3, rtol=3e-3)), \
        float(jnp.max(jnp.abs(outputs - ref_out)))
    assert bool(jnp.allclose(h_n, ref_h, atol=3e-3, rtol=3e-3))
    assert bool(jnp.allclose(c_n, ref_c, atol=3e-3, rtol=3e-3))

    print("KERNEL_OK")
</pallas_src>

<mosaic_0001>
module attributes {stable_mosaic.version = 11 : i64} {
  func.func @kernel(%arg0: i32, %arg1: i32, %arg2: memref<1x8x2x128xf32, #tpu.memory_space<vmem>>, %arg3: memref<1x32x128xf32, #tpu.memory_space<vmem>>, %arg4: memref<1x8x2x32xf32, #tpu.memory_space<vmem>>, %arg5: memref<1x2x32xf32, #tpu.memory_space<vmem>>, %arg6: memref<1x2x32xf32, #tpu.memory_space<vmem>>, %arg7: memref<2x32xf32, #tpu.memory_space<vmem>>, %arg8: memref<2x32xf32, #tpu.memory_space<vmem>>) attributes {dimension_semantics = [#tpu.dimension_semantics<parallel>, #tpu.dimension_semantics<arbitrary>], iteration_bounds = array<i64: 2, 1>, scalar_prefetch = 0 : i64, scratch_operands = 2 : i64, tpu.core_type = #tpu.core_type<tc>, window_params = [{transform_indices = @transform_0, window_bounds = array<i64: 1, 8, 2, 128>}, {transform_indices = @transform_1, window_bounds = array<i64: 1, 32, 128>}, {transform_indices = @transform_2, window_bounds = array<i64: 1, 8, 2, 32>}, {transform_indices = @transform_3, window_bounds = array<i64: 1, 2, 32>}, {transform_indices = @transform_4, window_bounds = array<i64: 1, 2, 32>}]} {
    %c0_i32 = arith.constant 0 : i32
    %0 = arith.cmpi eq, %arg1, %c0_i32 : i32
    %1 = arith.extui %0 : i1 to i32
    %c0_i32_0 = arith.constant 0 : i32
    %2 = arith.cmpi ne, %1, %c0_i32_0 : i32
    scf.if %2 {
      %cst_96 = arith.constant 0.000000e+00 : f32
      %303 = vector.broadcast %cst_96 : f32 to vector<2x32xf32>
      %c0_97 = arith.constant 0 : index
      %c0_98 = arith.constant 0 : index
      %304 = vector.load %arg7[%c0_97, %c0_98] : memref<2x32xf32, #tpu.memory_space<vmem>>, vector<2x32xf32>
      tpu.vector_store %arg7[%c0_97, %c0_98], %303 {strides = array<i32>} : memref<2x32xf32, #tpu.memory_space<vmem>>, vector<2x32xf32>,
      %cst_99 = arith.constant 0.000000e+00 : f32
      %305 = vector.broadcast %cst_99 : f32 to vector<2x32xf32>
      %c0_100 = arith.constant 0 : index
      %c0_101 = arith.constant 0 : index
      %306 = vector.load %arg8[%c0_100, %c0_101] : memref<2x32xf32, #tpu.memory_space<vmem>>, vector<2x32xf32>
      tpu.vector_store %arg8[%c0_100, %c0_101], %305 {strides = array<i32>} : memref<2x32xf32, #tpu.memory_space<vmem>>, vector<2x32xf32>,
    } else {
    }
    %c0 = arith.constant 0 : index
    %c0_1 = arith.constant 0 : index
    %c0_2 = arith.constant 0 : index
    %3 = vector.load %arg3[%c0, %c0_1, %c0_2] : memref<1x32x128xf32, #tpu.memory_space<vmem>>, vector<1x32x128xf32>
    %4 = vector.shape_cast %3 : vector<1x32x128xf32> to vector<32x128xf32>
    %c2_i32 = arith.constant 2 : i32
    %5 = arith.muli %c2_i32, %arg0 : i32
    %c1_i32 = arith.constant 1 : i32
    %6 = arith.subi %c1_i32, %5 : i32
    %c7_i32 = arith.constant 7 : i32
    %7 = arith.muli %arg0, %c7_i32 : i32
    %c0_3 = arith.constant 0 : index
    %c0_4 = arith.constant 0 : index
    %8 = vector.load %arg7[%c0_3, %c0_4] : memref<2x32xf32, #tpu.memory_space<vmem>>, vector<2x32xf32>
    %c0_5 = arith.constant 0 : index
    %c0_6 = arith.constant 0 : index
    %9 = vector.load %arg8[%c0_5, %c0_6] : memref<2x32xf32, #tpu.memory_space<vmem>>, vector<2x32xf32>
    %c0_i32_7 = arith.constant 0 : i32
    %10 = arith.muli %6, %c0_i32_7 : i32
    %11 = arith.addi %7, %10 : i32
    %c0_8 = arith.constant 0 : index
    %12 = arith.index_cast %11 : i32 to index
    %c0_9 = arith.constant 0 : index
    %c0_10 = arith.constant 0 : index
    %13 = vector.load %arg2[%c0_8, %12, %c0_9, %c0_10] : memref<1x8x2x128xf32, #tpu.memory_space<vmem>>, vector<1x1x2x128xf32>
    %14 = vector.shape_cast %13 : vector<1x1x2x128xf32> to vector<2x128xf32>
    %cst = arith.constant dense<0.000000e+00> : vector<2x128xf32>
    %15 = tpu.matmul %8, %4, %cst {dimension_numbers = #tpu.dot_dimension_numbers<[1], [0], [0], [1], [0, 0, 1, 1], [], []>} : vector<2x32xf32>, vector<32x128xf32>, vector<2x128xf32> -> vector<2x128xf32>
    %16 = arith.addf %14, %15 : vector<2x128xf32>
    %17 = vector.extract_strided_slice %16 {offsets = [0, 0], sizes = [2, 32], strides = [1, 1]} : vector<2x128xf32> to vector<2x32xf32>
    %18 = arith.negf %17 : vector<2x32xf32>
    %19 = math.exp %18 : vector<2x32xf32>
    %cst_11 = arith.constant 1.000000e+00 : f32
    %20 = vector.broadcast %cst_11 : f32 to vector<2x32xf32>
    %21 = arith.addf %20, %19 : vector<2x32xf32>
    %22 = arith.divf %20, %21 : vector<2x32xf32>
    %23 = vector.extract_strided_slice %16 {offsets = [0, 32], sizes = [2, 32], strides = [1, 1]} : vector<2x128xf32> to vector<2x32xf32>
    %24 = arith.negf %23 : vector<2x32xf32>
    %25 = math.exp %24 : vector<2x32xf32>
    %cst_12 = arith.constant 1.000000e+00 : f32
    %26 = vector.broadcast %cst_12 : f32 to vector<2x32xf32>
    %27 = arith.addf %26, %25 : vector<2x32xf32>
    %28 = arith.divf %26, %27 : vector<2x32xf32>
    %29 = vector.extract_strided_slice %16 {offsets = [0, 64], sizes = [2, 32], strides = [1, 1]} : vector<2x128xf32> to vector<2x32xf32>
    %30 = math.tanh %29 : vector<2x32xf32>
    %31 = vector.extract_strided_slice %16 {offsets = [0, 96], sizes = [2, 32], strides = [1, 1]} : vector<2x128xf32> to vector<2x32xf32>
    %32 = arith.negf %31 : vector<2x32xf32>
    %33 = math.exp %32 : vector<2x32xf32>
    %cst_13 = arith.constant 1.000000e+00 : f32
    %34 = vector.broadcast %cst_13 : f32 to vector<2x32xf32>
    %35 = arith.addf %34, %33 : vector<2x32xf32>
    %36 = arith.divf %34, %35 : vector<2x32xf32>
    %37 = arith.mulf %28, %9 : vector<2x32xf32>
    %38 = arith.mulf %22, %30 : vector<2x32xf32>
    %39 = arith.addf %37, %38 : vector<2x32xf32>
    %40 = math.tanh %39 : vector<2x32xf32>
    %41 = arith.mulf %36, %40 : vector<2x32xf32>
    %c0_14 = arith.constant 0 : index
    %42 = arith.index_cast %11 : i32 to index
    %c0_15 = arith.constant 0 : index
    %c0_16 = arith.constant 0 : index
    %43 = vector.load %arg4[%c0_14, %42, %c0_15, %c0_16] : memref<1x8x2x32xf32, #tpu.memory_space<vmem>>, vector<1x1x2x32xf32>
    %44 = vector.shape_cast %43 : vector<1x1x2x32xf32> to vector<2x32xf32>
    %45 = vector.shape_cast %41 : vector<2x32xf32> to vector<1x1x2x32xf32>
    tpu.vector_store %arg4[%c0_14, %42, %c0_15, %c0_16], %45 {strides = array<i32>} : memref<1x8x2x32xf32, #tpu.memory_space<vmem>>, vector<1x1x2x32xf32>,
    %c1_i32_17 = arith.constant 1 : i32
    %46 = arith.muli %6, %c1_i32_17 : i32
    %47 = arith.addi %7, %46 : i32
    %c0_18 = arith.constant 0 : index
    %48 = arith.index_cast %47 : i32 to index
    %c0_19 = arith.constant 0 : index
    %c0_20 = arith.constant 0 : index
    %49 = vector.load %arg2[%c0_18, %48, %c0_19, %c0_20] : memref<1x8x2x128xf32, #tpu.memory_space<vmem>>, vector<1x1x2x128xf32>
    %50 = vector.shape_cast %49 : vector<1x1x2x128xf32> to vector<2x128xf32>
    %cst_21 = arith.constant dense<0.000000e+00> : vector<2x128xf32>
    %51 = tpu.matmul %41, %4, %cst_21 {dimension_numbers = #tpu.dot_dimension_numbers<[1], [0], [0], [1], [0, 0, 1, 1], [], []>} : vector<2x32xf32>, vector<32x128xf32>, vector<2x128xf32> -> vector<2x128xf32>
    %52 = arith.addf %50, %51 : vector<2x128xf32>
    %53 = vector.extract_strided_slice %52 {offsets = [0, 0], sizes = [2, 32], strides = [1, 1]} : vector<2x128xf32> to vector<2x32xf32>
    %54 = arith.negf %53 : vector<2x32xf32>
    %55 = math.exp %54 : vector<2x32xf32>
    %cst_22 = arith.constant 1.000000e+00 : f32
    %56 = vector.broadcast %cst_22 : f32 to vector<2x32xf32>
    %57 = arith.addf %56, %55 : vector<2x32xf32>
    %58 = arith.divf %56, %57 : vector<2x32xf32>
    %59 = vector.extract_strided_slice %52 {offsets = [0, 32], sizes = [2, 32], strides = [1, 1]} : vector<2x128xf32> to vector<2x32xf32>
    %60 = arith.negf %59 : vector<2x32xf32>
    %61 = math.exp %60 : vector<2x32xf32>
    %cst_23 = arith.constant 1.000000e+00 : f32
    %62 = vector.broadcast %cst_23 : f32 to vector<2x32xf32>
    %63 = arith.addf %62, %61 : vector<2x32xf32>
    %64 = arith.divf %62, %63 : vector<2x32xf32>
    %65 = vector.extract_strided_slice %52 {offsets = [0, 64], sizes = [2, 32], strides = [1, 1]} : vector<2x128xf32> to vector<2x32xf32>
    %66 = math.tanh %65 : vector<2x32xf32>
    %67 = vector.extract_strided_slice %52 {offsets = [0, 96], sizes = [2, 32], strides = [1, 1]} : vector<2x128xf32> to vector<2x32xf32>
    %68 = arith.negf %67 : vector<2x32xf32>
    %69 = math.exp %68 : vector<2x32xf32>
    %cst_24 = arith.constant 1.000000e+00 : f32
    %70 = vector.broadcast %cst_24 : f32 to vector<2x32xf32>
    %71 = arith.addf %70, %69 : vector<2x32xf32>
    %72 = arith.divf %70, %71 : vector<2x32xf32>
    %73 = arith.mulf %64, %39 : vector<2x32xf32>
    %74 = arith.mulf %58, %66 : vector<2x32xf32>
    %75 = arith.addf %73, %74 : vector<2x32xf32>
    %76 = math.tanh %75 : vector<2x32xf32>
    %77 = arith.mulf %72, %76 : vector<2x32xf32>
    %c0_25 = arith.constant 0 : index
    %78 = arith.index_cast %47 : i32 to index
    %c0_26 = arith.constant 0 : index
    %c0_27 = arith.constant 0 : index
    %79 = vector.load %arg4[%c0_25, %78, %c0_26, %c0_27] : memref<1x8x2x32xf32, #tpu.memory_space<vmem>>, vector<1x1x2x32xf32>
    %80 = vector.shape_cast %79 : vector<1x1x2x32xf32> to vector<2x32xf32>
    %81 = vector.shape_cast %77 : vector<2x32xf32> to vector<1x1x2x32xf32>
    tpu.vector_store %arg4[%c0_25, %78, %c0_26, %c0_27], %81 {strides = array<i32>} : memref<1x8x2x32xf32, #tpu.memory_space<vmem>>, vector<1x1x2x32xf32>,
    %c2_i32_28 = arith.constant 2 : i32
    %82 = arith.muli %6, %c2_i32_28 : i32
    %83 = arith.addi %7, %82 : i32
    %c0_29 = arith.constant 0 : index
    %84 = arith.index_cast %83 : i32 to index
    %c0_30 = arith.constant 0 : index
    %c0_31 = arith.constant 0 : index
    %85 = vector.load %arg2[%c0_29, %84, %c0_30, %c0_31] : memref<1x8x2x128xf32, #tpu.memory_space<vmem>>, vector<1x1x2x128xf32>
    %86 = vector.shape_cast %85 : vector<1x1x2x128xf32> to vector<2x128xf32>
    %cst_32 = arith.constant dense<0.000000e+00> : vector<2x128xf32>
    %87 = tpu.matmul %77, %4, %cst_32 {dimension_numbers = #tpu.dot_dimension_numbers<[1], [0], [0], [1], [0, 0, 1, 1], [], []>} : vector<2x32xf32>, vector<32x128xf32>, vector<2x128xf32> -> vector<2x128xf32>
    %88 = arith.addf %86, %87 : vector<2x128xf32>
    %89 = vector.extract_strided_slice %88 {offsets = [0, 0], sizes = [2, 32], strides = [1, 1]} : vector<2x128xf32> to vector<2x32xf32>
    %90 = arith.negf %89 : vector<2x32xf32>
    %91 = math.exp %90 : vector<2x32xf32>
    %cst_33 = arith.constant 1.000000e+00 : f32
    %92 = vector.broadcast %cst_33 : f32 to vector<2x32xf32>
    %93 = arith.addf %92, %91 : vector<2x32xf32>
    %94 = arith.divf %92, %93 : vector<2x32xf32>
    %95 = vector.extract_strided_slice %88 {offsets = [0, 32], sizes = [2, 32], strides = [1, 1]} : vector<2x128xf32> to vector<2x32xf32>
    %96 = arith.negf %95 : vector<2x32xf32>
    %97 = math.exp %96 : vector<2x32xf32>
    %cst_34 = arith.constant 1.000000e+00 : f32
    %98 = vector.broadcast %cst_34 : f32 to vector<2x32xf32>
    %99 = arith.addf %98, %97 : vector<2x32xf32>
    %100 = arith.divf %98, %99 : vector<2x32xf32>
    %101 = vector.extract_strided_slice %88 {offsets = [0, 64], sizes = [2, 32], strides = [1, 1]} : vector<2x128xf32> to vector<2x32xf32>
    %102 = math.tanh %101 : vector<2x32xf32>
    %103 = vector.extract_strided_slice %88 {offsets = [0, 96], sizes = [2, 32], strides = [1, 1]} : vector<2x128xf32> to vector<2x32xf32>
    %104 = arith.negf %103 : vector<2x32xf32>
    %105 = math.exp %104 : vector<2x32xf32>
    %cst_35 = arith.constant 1.000000e+00 : f32
    %106 = vector.broadcast %cst_35 : f32 to vector<2x32xf32>
    %107 = arith.addf %106, %105 : vector<2x32xf32>
    %108 = arith.divf %106, %107 : vector<2x32xf32>
    %109 = arith.mulf %100, %75 : vector<2x32xf32>
    %110 = arith.mulf %94, %102 : vector<2x32xf32>
    %111 = arith.addf %109, %110 : vector<2x32xf32>
    %112 = math.tanh %111 : vector<2x32xf32>
    %113 = arith.mulf %108, %112 : vector<2x32xf32>
    %c0_36 = arith.constant 0 : index
    %114 = arith.index_cast %83 : i32 to index
    %c0_37 = arith.constant 0 : index
    %c0_38 = arith.constant 0 : index
    %115 = vector.load %arg4[%c0_36, %114, %c0_37, %c0_38] : memref<1x8x2x32xf32, #tpu.memory_space<vmem>>, vector<1x1x2x32xf32>
    %116 = vector.shape_cast %115 : vector<1x1x2x32xf32> to vector<2x32xf32>
    %117 = vector.shape_cast %113 : vector<2x32xf32> to vector<1x1x2x32xf32>
    tpu.vector_store %arg4[%c0_36, %114, %c0_37, %c0_38], %117 {strides = array<i32>} : memref<1x8x2x32xf32, #tpu.memory_space<vmem>>, vector<1x1x2x32xf32>,
    %c3_i32 = arith.constant 3 : i32
    %118 = arith.muli %6, %c3_i32 : i32
    %119 = arith.addi %7, %118 : i32
    %c0_39 = arith.constant 0 : index
    %120 = arith.index_cast %119 : i32 to index
    %c0_40 = arith.constant 0 : index
    %c0_41 = arith.constant 0 : index
    %121 = vector.load %arg2[%c0_39, %120, %c0_40, %c0_41] : memref<1x8x2x128xf32, #tpu.memory_space<vmem>>, vector<1x1x2x128xf32>
    %122 = vector.shape_cast %121 : vector<1x1x2x128xf32> to vector<2x128xf32>
    %cst_42 = arith.constant dense<0.000000e+00> : vector<2x128xf32>
    %123 = tpu.matmul %113, %4, %cst_42 {dimension_numbers = #tpu.dot_dimension_numbers<[1], [0], [0], [1], [0, 0, 1, 1], [], []>} : vector<2x32xf32>, vector<32x128xf32>, vector<2x128xf32> -> vector<2x128xf32>
    %124 = arith.addf %122, %123 : vector<2x128xf32>
    %125 = vector.extract_strided_slice %124 {offsets = [0, 0], sizes = [2, 32], strides = [1, 1]} : vector<2x128xf32> to vector<2x32xf32>
    %126 = arith.negf %125 : vector<2x32xf32>
    %127 = math.exp %126 : vector<2x32xf32>
    %cst_43 = arith.constant 1.000000e+00 : f32
    %128 = vector.broadcast %cst_43 : f32 to vector<2x32xf32>
    %129 = arith.addf %128, %127 : vector<2x32xf32>
    %130 = arith.divf %128, %129 : vector<2x32xf32>
    %131 = vector.extract_strided_slice %124 {offsets = [0, 32], sizes = [2, 32], strides = [1, 1]} : vector<2x128xf32> to vector<2x32xf32>
    %132 = arith.negf %131 : vector<2x32xf32>
    %133 = math.exp %132 : vector<2x32xf32>
    %cst_44 = arith.constant 1.000000e+00 : f32
    %134 = vector.broadcast %cst_44 : f32 to vector<2x32xf32>
    %135 = arith.addf %134, %133 : vector<2x32xf32>
    %136 = arith.divf %134, %135 : vector<2x32xf32>
    %137 = vector.extract_strided_slice %124 {offsets = [0, 64], sizes = [2, 32], strides = [1, 1]} : vector<2x128xf32> to vector<2x32xf32>
    %138 = math.tanh %137 : vector<2x32xf32>
    %139 = vector.extract_strided_slice %124 {offsets = [0, 96], sizes = [2, 32], strides = [1, 1]} : vector<2x128xf32> to vector<2x32xf32>
    %140 = arith.negf %139 : vector<2x32xf32>
    %141 = math.exp %140 : vector<2x32xf32>
    %cst_45 = arith.constant 1.000000e+00 : f32
    %142 = vector.broadcast %cst_45 : f32 to vector<2x32xf32>
    %143 = arith.addf %142, %141 : vector<2x32xf32>
    %144 = arith.divf %142, %143 : vector<2x32xf32>
    %145 = arith.mulf %136, %111 : vector<2x32xf32>
    %146 = arith.mulf %130, %138 : vector<2x32xf32>
    %147 = arith.addf %145, %146 : vector<2x32xf32>
    %148 = math.tanh %147 : vector<2x32xf32>
    %149 = arith.mulf %144, %148 : vector<2x32xf32>
    %c0_46 = arith.constant 0 : index
    %150 = arith.index_cast %119 : i32 to index
    %c0_47 = arith.constant 0 : index
    %c0_48 = arith.constant 0 : index
    %151 = vector.load %arg4[%c0_46, %150, %c0_47, %c0_48] : memref<1x8x2x32xf32, #tpu.memory_space<vmem>>, vector<1x1x2x32xf32>
    %152 = vector.shape_cast %151 : vector<1x1x2x32xf32> to vector<2x32xf32>
    %153 = vector.shape_cast %149 : vector<2x32xf32> to vector<1x1x2x32xf32>
    tpu.vector_store %arg4[%c0_46, %150, %c0_47, %c0_48], %153 {strides = array<i32>} : memref<1x8x2x32xf32, #tpu.memory_space<vmem>>, vector<1x1x2x32xf32>,
    %c4_i32 = arith.constant 4 : i32
    %154 = arith.muli %6, %c4_i32 : i32
    %155 = arith.addi %7, %154 : i32
    %c0_49 = arith.constant 0 : index
    %156 = arith.index_cast %155 : i32 to index
    %c0_50 = arith.constant 0 : index
    %c0_51 = arith.constant 0 : index
    %157 = vector.load %arg2[%c0_49, %156, %c0_50, %c0_51] : memref<1x8x2x128xf32, #tpu.memory_space<vmem>>, vector<1x1x2x128xf32>
    %158 = vector.shape_cast %157 : vector<1x1x2x128xf32> to vector<2x128xf32>
    %cst_52 = arith.constant dense<0.000000e+00> : vector<2x128xf32>
    %159 = tpu.matmul %149, %4, %cst_52 {dimension_numbers = #tpu.dot_dimension_numbers<[1], [0], [0], [1], [0, 0, 1, 1], [], []>} : vector<2x32xf32>, vector<32x128xf32>, vector<2x128xf32> -> vector<2x128xf32>
    %160 = arith.addf %158, %159 : vector<2x128xf32>
    %161 = vector.extract_strided_slice %160 {offsets = [0, 0], sizes = [2, 32], strides = [1, 1]} : vector<2x128xf32> to vector<2x32xf32>
    %162 = arith.negf %161 : vector<2x32xf32>
    %163 = math.exp %162 : vector<2x32xf32>
    %cst_53 = arith.constant 1.000000e+00 : f32
    %164 = vector.broadcast %cst_53 : f32 to vector<2x32xf32>
    %165 = arith.addf %164, %163 : vector<2x32xf32>
    %166 = arith.divf %164, %165 : vector<2x32xf32>
    %167 = vector.extract_strided_slice %160 {offsets = [0, 32], sizes = [2, 32], strides = [1, 1]} : vector<2x128xf32> to vector<2x32xf32>
    %168 = arith.negf %167 : vector<2x32xf32>
    %169 = math.exp %168 : vector<2x32xf32>
    %cst_54 = arith.constant 1.000000e+00 : f32
    %170 = vector.broadcast %cst_54 : f32 to vector<2x32xf32>
    %171 = arith.addf %170, %169 : vector<2x32xf32>
    %172 = arith.divf %170, %171 : vector<2x32xf32>
    %173 = vector.extract_strided_slice %160 {offsets = [0, 64], sizes = [2, 32], strides = [1, 1]} : vector<2x128xf32> to vector<2x32xf32>
    %174 = math.tanh %173 : vector<2x32xf32>
    %175 = vector.extract_strided_slice %160 {offsets = [0, 96], sizes = [2, 32], strides = [1, 1]} : vector<2x128xf32> to vector<2x32xf32>
    %176 = arith.negf %175 : vector<2x32xf32>
    %177 = math.exp %176 : vector<2x32xf32>
    %cst_55 = arith.constant 1.000000e+00 : f32
    %178 = vector.broadcast %cst_55 : f32 to vector<2x32xf32>
    %179 = arith.addf %178, %177 : vector<2x32xf32>
    %180 = arith.divf %178, %179 : vector<2x32xf32>
    %181 = arith.mulf %172, %147 : vector<2x32xf32>
    %182 = arith.mulf %166, %174 : vector<2x32xf32>
    %183 = arith.addf %181, %182 : vector<2x32xf32>
    %184 = math.tanh %183 : vector<2x32xf32>
    %185 = arith.mulf %180, %184 : vector<2x32xf32>
    %c0_56 = arith.constant 0 : index
    %186 = arith.index_cast %155 : i32 to index
    %c0_57 = arith.constant 0 : index
    %c0_58 = arith.constant 0 : index
    %187 = vector.load %arg4[%c0_56, %186, %c0_57, %c0_58] : memref<1x8x2x32xf32, #tpu.memory_space<vmem>>, vector<1x1x2x32xf32>
    %188 = vector.shape_cast %187 : vector<1x1x2x32xf32> to vector<2x32xf32>
    %189 = vector.shape_cast %185 : vector<2x32xf32> to vector<1x1x2x32xf32>
    tpu.vector_store %arg4[%c0_56, %186, %c0_57, %c0_58], %189 {strides = array<i32>} : memref<1x8x2x32xf32, #tpu.memory_space<vmem>>, vector<1x1x2x32xf32>,
    %c5_i32 = arith.constant 5 : i32
    %190 = arith.muli %6, %c5_i32 : i32
    %191 = arith.addi %7, %190 : i32
    %c0_59 = arith.constant 0 : index
    %192 = arith.index_cast %191 : i32 to index
    %c0_60 = arith.constant 0 : index
    %c0_61 = arith.constant 0 : index
    %193 = vector.load %arg2[%c0_59, %192, %c0_60, %c0_61] : memref<1x8x2x128xf32, #tpu.memory_space<vmem>>, vector<1x1x2x128xf32>
    %194 = vector.shape_cast %193 : vector<1x1x2x128xf32> to vector<2x128xf32>
    %cst_62 = arith.constant dense<0.000000e+00> : vector<2x128xf32>
    %195 = tpu.matmul %185, %4, %cst_62 {dimension_numbers = #tpu.dot_dimension_numbers<[1], [0], [0], [1], [0, 0, 1, 1], [], []>} : vector<2x32xf32>, vector<32x128xf32>, vector<2x128xf32> -> vector<2x128xf32>
    %196 = arith.addf %194, %195 : vector<2x128xf32>
    %197 = vector.extract_strided_slice %196 {offsets = [0, 0], sizes = [2, 32], strides = [1, 1]} : vector<2x128xf32> to vector<2x32xf32>
    %198 = arith.negf %197 : vector<2x32xf32>
    %199 = math.exp %198 : vector<2x32xf32>
    %cst_63 = arith.constant 1.000000e+00 : f32
    %200 = vector.broadcast %cst_63 : f32 to vector<2x32xf32>
    %201 = arith.addf %200, %199 : vector<2x32xf32>
    %202 = arith.divf %200, %201 : vector<2x32xf32>
    %203 = vector.extract_strided_slice %196 {offsets = [0, 32], sizes = [2, 32], strides = [1, 1]} : vector<2x128xf32> to vector<2x32xf32>
    %204 = arith.negf %203 : vector<2x32xf32>
    %205 = math.exp %204 : vector<2x32xf32>
    %cst_64 = arith.constant 1.000000e+00 : f32
    %206 = vector.broadcast %cst_64 : f32 to vector<2x32xf32>
    %207 = arith.addf %206, %205 : vector<2x32xf32>
    %208 = arith.divf %206, %207 : vector<2x32xf32>
    %209 = vector.extract_strided_slice %196 {offsets = [0, 64], sizes = [2, 32], strides = [1, 1]} : vector<2x128xf32> to vector<2x32xf32>
    %210 = math.tanh %209 : vector<2x32xf32>
    %211 = vector.extract_strided_slice %196 {offsets = [0, 96], sizes = [2, 32], strides = [1, 1]} : vector<2x128xf32> to vector<2x32xf32>
    %212 = arith.negf %211 : vector<2x32xf32>
    %213 = math.exp %212 : vector<2x32xf32>
    %cst_65 = arith.constant 1.000000e+00 : f32
    %214 = vector.broadcast %cst_65 : f32 to vector<2x32xf32>
    %215 = arith.addf %214, %213 : vector<2x32xf32>
    %216 = arith.divf %214, %215 : vector<2x32xf32>
    %217 = arith.mulf %208, %183 : vector<2x32xf32>
    %218 = arith.mulf %202, %210 : vector<2x32xf32>
    %219 = arith.addf %217, %218 : vector<2x32xf32>
    %220 = math.tanh %219 : vector<2x32xf32>
    %221 = arith.mulf %216, %220 : vector<2x32xf32>
    %c0_66 = arith.constant 0 : index
    %222 = arith.index_cast %191 : i32 to index
    %c0_67 = arith.constant 0 : index
    %c0_68 = arith.constant 0 : index
    %223 = vector.load %arg4[%c0_66, %222, %c0_67, %c0_68] : memref<1x8x2x32xf32, #tpu.memory_space<vmem>>, vector<1x1x2x32xf32>
    %224 = vector.shape_cast %223 : vector<1x1x2x32xf32> to vector<2x32xf32>
    %225 = vector.shape_cast %221 : vector<2x32xf32> to vector<1x1x2x32xf32>
    tpu.vector_store %arg4[%c0_66, %222, %c0_67, %c0_68], %225 {strides = array<i32>} : memref<1x8x2x32xf32, #tpu.memory_space<vmem>>, vector<1x1x2x32xf32>,
    %c6_i32 = arith.constant 6 : i32
    %226 = arith.muli %6, %c6_i32 : i32
    %227 = arith.addi %7, %226 : i32
    %c0_69 = arith.constant 0 : index
    %228 = arith.index_cast %227 : i32 to index
    %c0_70 = arith.constant 0 : index
    %c0_71 = arith.constant 0 : index
    %229 = vector.load %arg2[%c0_69, %228, %c0_70, %c0_71] : memref<1x8x2x128xf32, #tpu.memory_space<vmem>>, vector<1x1x2x128xf32>
    %230 = vector.shape_cast %229 : vector<1x1x2x128xf32> to vector<2x128xf32>
    %cst_72 = arith.constant dense<0.000000e+00> : vector<2x128xf32>
    %231 = tpu.matmul %221, %4, %cst_72 {dimension_numbers = #tpu.dot_dimension_numbers<[1], [0], [0], [1], [0, 0, 1, 1], [], []>} : vector<2x32xf32>, vector<32x128xf32>, vector<2x128xf32> -> vector<2x128xf32>
    %232 = arith.addf %230, %231 : vector<2x128xf32>
    %233 = vector.extract_strided_slice %232 {offsets = [0, 0], sizes = [2, 32], strides = [1, 1]} : vector<2x128xf32> to vector<2x32xf32>
    %234 = arith.negf %233 : vector<2x32xf32>
    %235 = math.exp %234 : vector<2x32xf32>
    %cst_73 = arith.constant 1.000000e+00 : f32
    %236 = vector.broadcast %cst_73 : f32 to vector<2x32xf32>
    %237 = arith.addf %236, %235 : vector<2x32xf32>
    %238 = arith.divf %236, %237 : vector<2x32xf32>
    %239 = vector.extract_strided_slice %232 {offsets = [0, 32], sizes = [2, 32], strides = [1, 1]} : vector<2x128xf32> to vector<2x32xf32>
    %240 = arith.negf %239 : vector<2x32xf32>
    %241 = math.exp %240 : vector<2x32xf32>
    %cst_74 = arith.constant 1.000000e+00 : f32
    %242 = vector.broadcast %cst_74 : f32 to vector<2x32xf32>
    %243 = arith.addf %242, %241 : vector<2x32xf32>
    %244 = arith.divf %242, %243 : vector<2x32xf32>
    %245 = vector.extract_strided_slice %232 {offsets = [0, 64], sizes = [2, 32], strides = [1, 1]} : vector<2x128xf32> to vector<2x32xf32>
    %246 = math.tanh %245 : vector<2x32xf32>
    %247 = vector.extract_strided_slice %232 {offsets = [0, 96], sizes = [2, 32], strides = [1, 1]} : vector<2x128xf32> to vector<2x32xf32>
    %248 = arith.negf %247 : vector<2x32xf32>
    %249 = math.exp %248 : vector<2x32xf32>
    %cst_75 = arith.constant 1.000000e+00 : f32
    %250 = vector.broadcast %cst_75 : f32 to vector<2x32xf32>
    %251 = arith.addf %250, %249 : vector<2x32xf32>
    %252 = arith.divf %250, %251 : vector<2x32xf32>
    %253 = arith.mulf %244, %219 : vector<2x32xf32>
    %254 = arith.mulf %238, %246 : vector<2x32xf32>
    %255 = arith.addf %253, %254 : vector<2x32xf32>
    %256 = math.tanh %255 : vector<2x32xf32>
    %257 = arith.mulf %252, %256 : vector<2x32xf32>
    %c0_76 = arith.constant 0 : index
    %258 = arith.index_cast %227 : i32 to index
    %c0_77 = arith.constant 0 : index
    %c0_78 = arith.constant 0 : index
    %259 = vector.load %arg4[%c0_76, %258, %c0_77, %c0_78] : memref<1x8x2x32xf32, #tpu.memory_space<vmem>>, vector<1x1x2x32xf32>
    %260 = vector.shape_cast %259 : vector<1x1x2x32xf32> to vector<2x32xf32>
    %261 = vector.shape_cast %257 : vector<2x32xf32> to vector<1x1x2x32xf32>
    tpu.vector_store %arg4[%c0_76, %258, %c0_77, %c0_78], %261 {strides = array<i32>} : memref<1x8x2x32xf32, #tpu.memory_space<vmem>>, vector<1x1x2x32xf32>,
    %c7_i32_79 = arith.constant 7 : i32
    %262 = arith.muli %6, %c7_i32_79 : i32
    %263 = arith.addi %7, %262 : i32
    %c0_80 = arith.constant 0 : index
    %264 = arith.index_cast %263 : i32 to index
    %c0_81 = arith.constant 0 : index
    %c0_82 = arith.constant 0 : index
    %265 = vector.load %arg2[%c0_80, %264, %c0_81, %c0_82] : memref<1x8x2x128xf32, #tpu.memory_space<vmem>>, vector<1x1x2x128xf32>
    %266 = vector.shape_cast %265 : vector<1x1x2x128xf32> to vector<2x128xf32>
    %cst_83 = arith.constant dense<0.000000e+00> : vector<2x128xf32>
    %267 = tpu.matmul %257, %4, %cst_83 {dimension_numbers = #tpu.dot_dimension_numbers<[1], [0], [0], [1], [0, 0, 1, 1], [], []>} : vector<2x32xf32>, vector<32x128xf32>, vector<2x128xf32> -> vector<2x128xf32>
    %268 = arith.addf %266, %267 : vector<2x128xf32>
    %269 = vector.extract_strided_slice %268 {offsets = [0, 0], sizes = [2, 32], strides = [1, 1]} : vector<2x128xf32> to vector<2x32xf32>
    %270 = arith.negf %269 : vector<2x32xf32>
    %271 = math.exp %270 : vector<2x32xf32>
    %cst_84 = arith.constant 1.000000e+00 : f32
    %272 = vector.broadcast %cst_84 : f32 to vector<2x32xf32>
    %273 = arith.addf %272, %271 : vector<2x32xf32>
    %274 = arith.divf %272, %273 : vector<2x32xf32>
    %275 = vector.extract_strided_slice %268 {offsets = [0, 32], sizes = [2, 32], strides = [1, 1]} : vector<2x128xf32> to vector<2x32xf32>
    %276 = arith.negf %275 : vector<2x32xf32>
    %277 = math.exp %276 : vector<2x32xf32>
    %cst_85 = arith.constant 1.000000e+00 : f32
    %278 = vector.broadcast %cst_85 : f32 to vector<2x32xf32>
    %279 = arith.addf %278, %277 : vector<2x32xf32>
    %280 = arith.divf %278, %279 : vector<2x32xf32>
    %281 = vector.extract_strided_slice %268 {offsets = [0, 64], sizes = [2, 32], strides = [1, 1]} : vector<2x128xf32> to vector<2x32xf32>
    %282 = math.tanh %281 : vector<2x32xf32>
    %283 = vector.extract_strided_slice %268 {offsets = [0, 96], sizes = [2, 32], strides = [1, 1]} : vector<2x128xf32> to vector<2x32xf32>
    %284 = arith.negf %283 : vector<2x32xf32>
    %285 = math.exp %284 : vector<2x32xf32>
    %cst_86 = arith.constant 1.000000e+00 : f32
    %286 = vector.broadcast %cst_86 : f32 to vector<2x32xf32>
    %287 = arith.addf %286, %285 : vector<2x32xf32>
    %288 = arith.divf %286, %287 : vector<2x32xf32>
    %289 = arith.mulf %280, %255 : vector<2x32xf32>
    %290 = arith.mulf %274, %282 : vector<2x32xf32>
    %291 = arith.addf %289, %290 : vector<2x32xf32>
    %292 = math.tanh %291 : vector<2x32xf32>
    %293 = arith.mulf %288, %292 : vector<2x32xf32>
    %c0_87 = arith.constant 0 : index
    %294 = arith.index_cast %263 : i32 to index
    %c0_88 = arith.constant 0 : index
    %c0_89 = arith.constant 0 : index
    %295 = vector.load %arg4[%c0_87, %294, %c0_88, %c0_89] : memref<1x8x2x32xf32, #tpu.memory_space<vmem>>, vector<1x1x2x32xf32>
    %296 = vector.shape_cast %295 : vector<1x1x2x32xf32> to vector<2x32xf32>
    %297 = vector.shape_cast %293 : vector<2x32xf32> to vector<1x1x2x32xf32>
    tpu.vector_store %arg4[%c0_87, %294, %c0_88, %c0_89], %297 {strides = array<i32>} : memref<1x8x2x32xf32, #tpu.memory_space<vmem>>, vector<1x1x2x32xf32>,
    %c8_i32 = arith.constant 8 : i32
    %c0_90 = arith.constant 0 : index
    %c0_91 = arith.constant 0 : index
    %298 = vector.load %arg7[%c0_90, %c0_91] : memref<2x32xf32, #tpu.memory_space<vmem>>, vector<2x32xf32>
    tpu.vector_store %arg7[%c0_90, %c0_91], %293 {strides = array<i32>} : memref<2x32xf32, #tpu.memory_space<vmem>>, vector<2x32xf32>,
    %c0_92 = arith.constant 0 : index
    %c0_93 = arith.constant 0 : index
    %299 = vector.load %arg8[%c0_92, %c0_93] : memref<2x32xf32, #tpu.memory_space<vmem>>, vector<2x32xf32>
    tpu.vector_store %arg8[%c0_92, %c0_93], %291 {strides = array<i32>} : memref<2x32xf32, #tpu.memory_space<vmem>>, vector<2x32xf32>,
    %c0_i32_94 = arith.constant 0 : i32
    %300 = arith.cmpi eq, %arg1, %c0_i32_94 : i32
    %301 = arith.extui %300 : i1 to i32
    %c0_i32_95 = arith.constant 0 : i32
    %302 = arith.cmpi ne, %301, %c0_i32_95 : i32
    scf.if %302 {
      %c0_96 = arith.constant 0 : index
      %c0_97 = arith.constant 0 : index
      %c0_98 = arith.constant 0 : index
      %303 = vector.load %arg5[%c0_96, %c0_97, %c0_98] : memref<1x2x32xf32, #tpu.memory_space<vmem>>, vector<1x2x32xf32>
      %304 = vector.shape_cast %303 : vector<1x2x32xf32> to vector<2x32xf32>
      %305 = vector.shape_cast %293 : vector<2x32xf32> to vector<1x2x32xf32>
      tpu.vector_store %arg5[%c0_96, %c0_97, %c0_98], %305 {strides = array<i32>} : memref<1x2x32xf32, #tpu.memory_space<vmem>>, vector<1x2x32xf32>,
      %c0_99 = arith.constant 0 : index
      %c0_100 = arith.constant 0 : index
      %c0_101 = arith.constant 0 : index
      %306 = vector.load %arg6[%c0_99, %c0_100, %c0_101] : memref<1x2x32xf32, #tpu.memory_space<vmem>>, vector<1x2x32xf32>
      %307 = vector.shape_cast %306 : vector<1x2x32xf32> to vector<2x32xf32>
      %308 = vector.shape_cast %291 : vector<2x32xf32> to vector<1x2x32xf32>
      tpu.vector_store %arg6[%c0_99, %c0_100, %c0_101], %308 {strides = array<i32>} : memref<1x2x32xf32, #tpu.memory_space<vmem>>, vector<1x2x32xf32>,
    } else {
    }
    return
  }
  func.func @transform_0(%arg0: i32, %arg1: i32) -> (i32, i32, i32, i32) {
    %c0_i32 = arith.constant 0 : i32
    %0 = arith.muli %arg0, %c0_i32 : i32
    %c2_i32 = arith.constant 2 : i32
    %1 = arith.muli %c2_i32, %arg0 : i32
    %c1_i32 = arith.constant 1 : i32
    %2 = arith.subi %c1_i32, %1 : i32
    %3 = arith.muli %2, %arg1 : i32
    %4 = arith.addi %0, %3 : i32
    %c0_i32_0 = arith.constant 0 : i32
    %c0_i32_1 = arith.constant 0 : i32
    %c0_i32_2 = arith.constant 0 : i32
    return %arg0, %4, %c0_i32_0, %c0_i32_1 : i32, i32, i32, i32
  }
  func.func @transform_1(%arg0: i32, %arg1: i32) -> (i32, i32, i32) {
    %c0_i32 = arith.constant 0 : i32
    %c0_i32_0 = arith.constant 0 : i32
    %c0_i32_1 = arith.constant 0 : i32
    return %arg0, %c0_i32, %c0_i32_0 : i32, i32, i32
  }
  func.func @transform_2(%arg0: i32, %arg1: i32) -> (i32, i32, i32, i32) {
    %c0_i32 = arith.constant 0 : i32
    %0 = arith.muli %arg0, %c0_i32 : i32
    %c2_i32 = arith.constant 2 : i32
    %1 = arith.muli %c2_i32, %arg0 : i32
    %c1_i32 = arith.constant 1 : i32
    %2 = arith.subi %c1_i32, %1 : i32
    %3 = arith.muli %2, %arg1 : i32
    %4 = arith.addi %0, %3 : i32
    %c0_i32_0 = arith.constant 0 : i32
    %c0_i32_1 = arith.constant 0 : i32
    %c0_i32_2 = arith.constant 0 : i32
    return %arg0, %4, %c0_i32_0, %c0_i32_1 : i32, i32, i32, i32
  }
  func.func @transform_3(%arg0: i32, %arg1: i32) -> (i32, i32, i32) {
    %c0_i32 = arith.constant 0 : i32
    %c0_i32_0 = arith.constant 0 : i32
    %c0_i32_1 = arith.constant 0 : i32
    return %arg0, %c0_i32, %c0_i32_0 : i32, i32, i32
  }
  func.func @transform_4(%arg0: i32, %arg1: i32) -> (i32, i32, i32) {
    %c0_i32 = arith.constant 0 : i32
    %c0_i32_0 = arith.constant 0 : i32
    %c0_i32_1 = arith.constant 0 : i32
    return %arg0, %c0_i32, %c0_i32_0 : i32, i32, i32
  }
}

</mosaic_0001>

<llo_original>
// kernel: encoder_forward.2
$region0: #{encoder_forward.2}
  #allocation0 [shape = 'u32[]', space=smem, size = 0x4, offset = 0x4, fixed_abs, tag = 'smem constant byte address 0x4 - core index']
  #allocation1 [shape = 'u32[144,128]{1,0:T(1,128)}', space=vmem, size = 0x12000, scoped, tag = 'internal scratch']
  #allocation2 [shape = 'f32[2,32]{1,0:T(2,128)}', space=vmem, size = 0x400, scoped, tag = 'scratch operand']
  #allocation3 [shape = 'f32[2,32]{1,0:T(2,128)}', space=vmem, size = 0x400, scoped, tag = 'scratch operand']
  %s0 = inlined_call_operand.vmem [shape: f32[2,8,2,128], index: 0, kind: input, shape index: {}]
  %s1 = inlined_call_operand.vmem [shape: f32[2,32,128], index: 1, kind: input, shape index: {}]
  %s2 = inlined_call_operand.vmem [shape: f32[2,8,2,32], index: 2, kind: output, shape index: {0}]
  %s3 = inlined_call_operand.vmem [shape: f32[2,2,32], index: 3, kind: output, shape index: {1}]
  %s4 = inlined_call_operand.vmem [shape: f32[2,2,32], index: 4, kind: output, shape index: {2}]
  %5 = xla_tuple %s2, %s3, %s4
  %s6 = sld [smem:[#allocation0]]
  $region65: #{encoder_forward.2} parent=0
    _
  %s8 = ssub.s32 1, %s6
  %s9 = scalar_select 0, %s8, %s6
  loop: start=0, step=1, limit=4
  $region2: #{encoder_forward.2} parent=0 // loop_pre_header
    _
  $region3: #{encoder_forward.2} parent=0 // loop_header
    %s11 = sphi 0, %s15
    %p12 = scmp.ge.s32.totalorder %s11, 4
    %s18 = sphi 0, %s30
    %s19 = sphi 0, %s26
    %s20 = sphi 0, %s18
    %s21 = sphi 0, %s19
    %s22 = sphi 0, %s20
    %s23 = sphi 0, %s21
    %s41 = sphi 0, %s43
    %s44 = sphi 0, %s41
    %s45 = sphi 0, %s44
    %s61 = sphi 0, %s45
    %s67 = sphi 0, %s69
    %s70 = sphi 0, %s67
    %s71 = sphi 0, %s70
    %s87 = sphi 0, %s71
    %s101 = sphi 0, %s103
    %s104 = sphi 0, %s101
    %s105 = sphi 0, %s104
    %s121 = sphi 0, %s105
    %s127 = sphi 0, %s129
    %s130 = sphi 0, %s127
    %s131 = sphi 0, %s130
    %s147 = sphi 0, %s131
    %s153 = sphi 0, %s155
    %s156 = sphi 0, %s153
    %s157 = sphi 0, %s156
    %s173 = sphi 0, %s157
  $region4: #{encoder_forward.2} parent=0 // loop_header_branch
    %14 = sbr.rel (%p12) target = $region8
  $region5: #{encoder_forward.2} parent=0 // loop_body
    %s16 = ssub.s32 %s11, 1
    %s17 = ssub.s32 %s11, 2
    %s24 = sadd.s32 1, %s19
    %p25 = scmp.ge.s32.totalorder %s24, 1
    %s26 = scalar_select %p25, 0, %s24
    %s27 = sadd.s32 1, %s18
    %s28 = scalar_select %p25, %s27, %s18
    %p29 = scmp.ge.s32.totalorder %s28, 2
    %s30 = scalar_select %p29, 0, %s28
    %s31 = smul.u32 %s18, 2
    %s32 = ssub.s32 1, %s31
    %s33 = smul.u32 %s32, %s19
    %s34 = smul.u32 %s30, 2
    %s35 = ssub.s32 1, %s34
    %s36 = smul.u32 %s35, %s26
    %s37 = ssub.s32 %s18, %s30
    %s38 = ssub.s32 %s33, %s36
    %s39 = sor.u32 %s37, %s38
    %p40 = scmp.eq.s32.totalorder %s39, 0
    %s42 = sadd.s32 %s41, 1
    %s43 = scalar_select %p40, %s41, %s42
    %p46 = pneg %p40
    %p47 = scmp.eq.s32.totalorder %s11, 1
    %p48 = por %p46, %p47
    %p49 = scmp.ne.s32.totalorder %s41, %s44
    %p50 = scmp.eq.s32.totalorder %s11, 0
    %p51 = por %p49, %p50
    %p52 = scmp.ne.s32.totalorder %s41, %s44
    %p53 = scmp.eq.s32.totalorder %s16, 1
    %p54 = por %p52, %p53
    %p55 = scmp.ne.s32.totalorder %s44, %s45
    %p56 = scmp.eq.s32.totalorder %s16, 0
    %p57 = por %p55, %p56
    %p58 = scmp.ne.s32.totalorder %s44, %s45
    %p59 = scmp.eq.s32.totalorder %s17, 1
    %p60 = por %p58, %p59
    %p62 = scmp.ne.s32.totalorder %s45, %s61
    %p63 = scmp.eq.s32.totalorder %s17, 0
    %p64 = por %p62, %p63
    %s65 = ssub.s32 %s18, %s30
    %p66 = scmp.eq.s32.totalorder %s65, 0
    %s68 = sadd.s32 %s67, 1
    %s69 = scalar_select %p66, %s67, %s68
    %p72 = pneg %p66
    %p73 = scmp.eq.s32.totalorder %s11, 1
    %p74 = por %p72, %p73
    %p75 = scmp.ne.s32.totalorder %s67, %s70
    %p76 = scmp.eq.s32.totalorder %s11, 0
    %p77 = por %p75, %p76
    %p78 = scmp.ne.s32.totalorder %s67, %s70
    %p79 = scmp.eq.s32.totalorder %s16, 1
    %p80 = por %p78, %p79
    %p81 = scmp.ne.s32.totalorder %s70, %s71
    %p82 = scmp.eq.s32.totalorder %s16, 0
    %p83 = por %p81, %p82
    %p84 = scmp.ne.s32.totalorder %s70, %s71
    %p85 = scmp.eq.s32.totalorder %s17, 1
    %p86 = por %p84, %p85
    %p88 = scmp.ne.s32.totalorder %s71, %s87
    %p89 = scmp.eq.s32.totalorder %s17, 0
    %p90 = por %p88, %p89
    %s91 = smul.u32 %s18, 2
    %s92 = ssub.s32 1, %s91
    %s93 = smul.u32 %s92, %s19
    %s94 = smul.u32 %s30, 2
    %s95 = ssub.s32 1, %s94
    %s96 = smul.u32 %s95, %s26
    %s97 = ssub.s32 %s18, %s30
    %s98 = ssub.s32 %s93, %s96
    %s99 = sor.u32 %s97, %s98
    %p100 = scmp.eq.s32.totalorder %s99, 0
    %s102 = sadd.s32 %s101, 1
    %s103 = scalar_select %p100, %s101, %s102
    %p106 = pneg %p100
    %p107 = scmp.eq.s32.totalorder %s11, 1
    %p108 = por %p106, %p107
    %p109 = scmp.ne.s32.totalorder %s101, %s104
    %p110 = scmp.eq.s32.totalorder %s11, 0
    %p111 = por %p109, %p110
    %p112 = scmp.ne.s32.totalorder %s101, %s104
    %p113 = scmp.eq.s32.totalorder %s16, 1
    %p114 = por %p112, %p113
    %p115 = scmp.ne.s32.totalorder %s104, %s105
    %p116 = scmp.eq.s32.totalorder %s16, 0
    %p117 = por %p115, %p116
    %p118 = scmp.ne.s32.totalorder %s104, %s105
    %p119 = scmp.eq.s32.totalorder %s17, 1
    %p120 = por %p118, %p119
    %p122 = scmp.ne.s32.totalorder %s105, %s121
    %p123 = scmp.eq.s32.totalorder %s17, 0
    %p124 = por %p122, %p123
    %s125 = ssub.s32 %s18, %s30
    %p126 = scmp.eq.s32.totalorder %s125, 0
    %s128 = sadd.s32 %s127, 1
    %s129 = scalar_select %p126, %s127, %s128
    %p132 = pneg %p126
    %p133 = scmp.eq.s32.totalorder %s11, 1
    %p134 = por %p132, %p133
    %p135 = scmp.ne.s32.totalorder %s127, %s130
    %p136 = scmp.eq.s32.totalorder %s11, 0
    %p137 = por %p135, %p136
    %p138 = scmp.ne.s32.totalorder %s127, %s130
    %p139 = scmp.eq.s32.totalorder %s16, 1
    %p140 = por %p138, %p139
    %p141 = scmp.ne.s32.totalorder %s130, %s131
    %p142 = scmp.eq.s32.totalorder %s16, 0
    %p143 = por %p141, %p142
    %p144 = scmp.ne.s32.totalorder %s130, %s131
    %p145 = scmp.eq.s32.totalorder %s17, 1
    %p146 = por %p144, %p145
    %p148 = scmp.ne.s32.totalorder %s131, %s147
    %p149 = scmp.eq.s32.totalorder %s17, 0
    %p150 = por %p148, %p149
    %s151 = ssub.s32 %s18, %s30
    %p152 = scmp.eq.s32.totalorder %s151, 0
    %s154 = sadd.s32 %s153, 1
    %s155 = scalar_select %p152, %s153, %s154
    %p158 = pneg %p152
    %p159 = scmp.eq.s32.totalorder %s11, 1
    %p160 = por %p158, %p159
    %p161 = scmp.ne.s32.totalorder %s153, %s156
    %p162 = scmp.eq.s32.totalorder %s11, 0
    %p163 = por %p161, %p162
    %p164 = scmp.ne.s32.totalorder %s153, %s156
    %p165 = scmp.eq.s32.totalorder %s16, 1
    %p166 = por %p164, %p165
    %p167 = scmp.ne.s32.totalorder %s156, %s157
    %p168 = scmp.eq.s32.totalorder %s16, 0
    %p169 = por %p167, %p168
    %p170 = scmp.ne.s32.totalorder %s156, %s157
    %p171 = scmp.eq.s32.totalorder %s17, 1
    %p172 = por %p170, %p171
    %p174 = scmp.ne.s32.totalorder %s157, %s173
    %p175 = scmp.eq.s32.totalorder %s17, 0
    %p176 = por %p174, %p175
    %p177 = scmp.le.s32.totalorder 1, %s11
    %p178 = scmp.lt.s32.totalorder %s11, 3
    %p179 = pnand %p177, %p178
    %p180 = pneg %p179
    // Predicated region
    $region9: #{encoder_forward.2} parent=5 // pred_check
      _
    $region10: #{encoder_forward.2} parent=5 // pred_check_branch
      %182 = sbr.rel (%p179) target = $region12
    $region11: #{encoder_forward.2} parent=5 // pred_region
      %s183 = ssub.s32 %s11, 1
    $region12: #{encoder_forward.2} parent=5 // pred_fallthru
      _
    %p184 = scmp.lt.s32.totalorder %s11, 2
    // Predicated region
    $region13: #{encoder_forward.2} parent=5 // pred_check
      %p185 = pneg %p184
    $region14: #{encoder_forward.2} parent=5 // pred_check_branch
      %187 = sbr.rel (%p185) target = $region16
    $region15: #{encoder_forward.2} parent=5 // pred_region
      // Predicated region
      $region17: #{encoder_forward.2} parent=15 // pred_check
        %p188 = pneg %p51
      $region18: #{encoder_forward.2} parent=15 // pred_check_branch
        %190 = sbr.rel (%p188) target = $region20
      $region19: #{encoder_forward.2} parent=15 // pred_region
        %s191 = smul.u32 %s18, 2
        %s192 = ssub.s32 1, %s191
        %s193 = smul.u32 %s192, %s19
        %s194 = smul.u32 8, %s193
        %p195 = scmp.lt.s32.totalorder %s18, 1
        %s196 = scalar_select %p195, %s18, 1
        %p197 = scmp.lt.s32.totalorder %s194, 7
        %s198 = scalar_select %p197, %s194, 7
        %s199 = smul.addr %s196, 8
        %s200 = sadd.s32 %s198, %s199
        %s201 = smul.addr %s200, 2
        %s202 = scalar_lea.vmem %s0, %s201
        %s203 = smul.u32 %s18, 2
        %s204 = ssub.s32 1, %s203
        %s205 = smul.u32 %s204, %s19
        %s206 = smul.u32 8, %s205
      $region20: #{encoder_forward.2} parent=15 // pred_fallthru
        _
      // Predicated region
      $region21: #{encoder_forward.2} parent=15 // pred_check
        %p207 = pneg %p77
      $region22: #{encoder_forward.2} parent=15 // pred_check_branch
        %209 = sbr.rel (%p207) target = $region24
      $region23: #{encoder_forward.2} parent=15 // pred_region
        %p210 = scmp.lt.s32.totalorder %s18, 1
        %s211 = scalar_select %p210, %s18, 1
        %s212 = smul.addr %s211, 4
        %s213 = smul.addr %s212, 8
        %s214 = scalar_lea.vmem %s1, %s213
      $region24: #{encoder_forward.2} parent=15 // pred_fallthru
        _
    $region16: #{encoder_forward.2} parent=5 // pred_fallthru
      _
    %p215 = scmp.le.s32.totalorder 1, %s11
    %p216 = scmp.lt.s32.totalorder %s11, 3
    %p217 = pnand %p215, %p216
    %p218 = pneg %p217
    // Predicated region
    $region25: #{encoder_forward.2} parent=5 // pred_check
      _
    $region26: #{encoder_forward.2} parent=5 // pred_check_branch
      %220 = sbr.rel (%p217) target = $region28
    $region27: #{encoder_forward.2} parent=5 // pred_region
      %s221 = ssub.s32 %s11, 1
      %s222 = smul.u32 %s20, 2
      %s223 = ssub.s32 1, %s222
      %s224 = smul.u32 %s223, %s21
      %s225 = smul.u32 8, %s224
      %p226 = scmp.lt.s32.totalorder %s20, 1
      %s227 = scalar_select %p226, %s20, 1
      %p228 = scmp.lt.s32.totalorder %s225, 7
      %s229 = scalar_select %p228, %s225, 7
      %s230 = smul.addr %s227, 8
      %s231 = sadd.s32 %s229, %s230
      %s232 = smul.addr %s231, 2
      %s233 = scalar_lea.vmem %s0, %s232
      %p234 = pneg %p57
      %p235 = pneg %p54
      %p236 = scmp.lt.s32.totalorder %s20, 1
      %s237 = scalar_select %p236, %s20, 1
      %s238 = smul.addr %s237, 4
      %s239 = smul.addr %s238, 8
      %s240 = scalar_lea.vmem %s1, %s239
      %p241 = pneg %p83
      %p242 = pneg %p80
      %p243 = pneg %p117
      %p244 = pneg %p114
      %s245 = smul.u32 %s20, 2
      %s246 = ssub.s32 1, %s245
      %s247 = smul.u32 %s246, %s21
      %s248 = smul.u32 8, %s247
      %p249 = scmp.lt.s32.totalorder %s20, 1
      %s250 = scalar_select %p249, %s20, 1
      %p251 = scmp.lt.s32.totalorder %s248, 7
      %s252 = scalar_select %p251, %s248, 7
      %s253 = smul.addr %s250, 8
      %s254 = sadd.s32 %s252, %s253
      %s255 = smul.addr %s254, 2
      %s256 = scalar_lea.vmem %s2, %s255
      %p257 = pneg %p143
      %p258 = pneg %p140
      %p259 = scmp.lt.s32.totalorder %s20, 1
      %s260 = scalar_select %p259, %s20, 1
      %s261 = smul.addr %s260, 2
      %s262 = scalar_lea.vmem %s3, %s261
      %p263 = pneg %p169
      %p264 = pneg %p166
      %p265 = scmp.lt.s32.totalorder %s20, 1
      %s266 = scalar_select %p265, %s20, 1
      %s267 = smul.addr %s266, 2
      %s268 = scalar_lea.vmem %s4, %s267
      %s269 = smul.u32 %s20, 2
      %s270 = ssub.s32 1, %s269
      %s271 = smul.u32 %s270, %s21
      %s272 = smul.u32 8, %s271
      %p273 = scmp.lt.s32.totalorder %s20, 1
      %s274 = scalar_select %p273, %s20, 1
      %p275 = scmp.lt.s32.totalorder %s272, 7
      %s276 = scalar_select %p275, %s272, 7
      %s277 = smul.addr %s274, 8
      %s278 = sadd.s32 %s276, %s277
      %s279 = smul.addr %s278, 2
      %s280 = scalar_lea.vmem %s0, %s279
      %s281 = smul.u32 %s20, 2
      %s282 = ssub.s32 1, %s281
      %s283 = smul.u32 %s282, %s21
      %s284 = smul.u32 8, %s283
      %p285 = scmp.lt.s32.totalorder %s20, 1
      %s286 = scalar_select %p285, %s20, 1
      %s287 = smul.addr %s286, 4
      %s288 = smul.addr %s287, 8
      %s289 = scalar_lea.vmem %s1, %s288
      %s290 = smul.u32 %s20, 2
      %s291 = ssub.s32 1, %s290
      %s292 = smul.u32 %s291, %s21
      %s293 = smul.u32 8, %s292
      %p294 = scmp.lt.s32.totalorder %s20, 1
      %s295 = scalar_select %p294, %s20, 1
      %p296 = scmp.lt.s32.totalorder %s293, 7
      %s297 = scalar_select %p296, %s293, 7
      %s298 = smul.addr %s295, 8
      %s299 = sadd.s32 %s297, %s298
      %s300 = smul.addr %s299, 2
      %s301 = scalar_lea.vmem %s2, %s300
      %s302 = smul.u32 %s20, 2
      %s303 = ssub.s32 1, %s302
      %s304 = smul.u32 %s303, %s21
      %s305 = smul.u32 8, %s304
      %p306 = scmp.lt.s32.totalorder %s20, 1
      %s307 = scalar_select %p306, %s20, 1
      %s308 = smul.addr %s307, 2
      %s309 = scalar_lea.vmem %s3, %s308
      %p310 = scmp.lt.s32.totalorder %s20, 1
      %s311 = scalar_select %p310, %s20, 1
      %s312 = smul.addr %s311, 2
      %s313 = scalar_lea.vmem %s4, %s312
      %p314 = scmp.eq.s32.totalorder %s21, 0
      // Predicated region
      $region29: #{encoder_forward.2} parent=27 // pred_check
        %p315 = pneg %p314
      $region30: #{encoder_forward.2} parent=27 // pred_check_branch
        %317 = sbr.rel (%p315) target = $region32
      $region31: #{encoder_forward.2} parent=27 // pred_region
        %vm318 = vcmask 254976
        %319 = vst.msk [vmem:[#allocation2] sm:$0x3] %vm318, 0.0
        %320 = vst.msk [vmem:[#allocation3] sm:$0x3] %vm318, 0.0
      $region32: #{encoder_forward.2} parent=27 // pred_fallthru
        _
      %v321 = vld [vmem:[%s289] sm:$0xff]
      %v322 = vld [vmem:[%s289 + $0x8] sm:$0xff]
      %v323 = vld [vmem:[%s289 + $0x10] sm:$0xff]
      %v324 = vld [vmem:[%s289 + $0x18] sm:$0xff]
      %s325 = smul.u32 %s20, 2
      %s326 = ssub.s32 1, %s325
      %s327 = smul.u32 %s20, 7
      %v328 = vld [vmem:[#allocation2] sm:$0x3]
      %v329 = vld [vmem:[#allocation3] sm:$0x3]
      %s330 = smul.u32 %s327, 2
      %s331 = scalar_lea.vmem %s280, %s330
      %v332 = vld [vmem:[%s331] sm:$0x3]
      %vm333 = vcmask 261120
      %v335 = vsel %vm333, %v328, 0
      %337 = vmatprep.subr.mxu0 0.0
      %338 = vmatpush1.msra.mxu0 %v321
      %339 = vmatprep.subr.mxu0 0.0
      %340 = vmatpush1.msra.mxu0 %v322
      %341 = vmatprep.subr.mxu0 0.0
      %342 = vmatpush1.msra.mxu0 %v323
      %343 = vmatprep.subr.mxu0 0.0
      %344 = vmatpush1.msra.mxu0 %v324
      %345 = vmatprep.subr.mxu0 0.0
      %346 = vmatpush1.msra.mxu0 0.0
      %347 = vmatprep.subr.mxu0 0.0
      %348 = vmatpush1.msra.mxu0 0.0
      %349 = vmatprep.subr.mxu0 0.0
      %350 = vmatpush1.msra.mxu0 0.0
      %351 = vmatprep.subr.mxu0 0.0
      %352 = vmatpush1.msra.mxu0 0.0
      %353 = vmatprep.subr.mxu0 0.0
      %354 = vmatpush1.msra.mxu0 0.0
      %355 = vmatprep.subr.mxu0 0.0
      %356 = vmatpush1.msra.mxu0 0.0
      %357 = vmatprep.subr.mxu0 0.0
      %358 = vmatpush1.msra.mxu0 0.0
      %359 = vmatprep.subr.mxu0 0.0
      %360 = vmatpush1.msra.mxu0 0.0
      %361 = vmatprep.subr.mxu0 0.0
      %362 = vmatpush1.msra.mxu0 0.0
      %363 = vmatprep.subr.mxu0 0.0
      %364 = vmatpush1.msra.mxu0 0.0
      %365 = vmatprep.subr.mxu0 0.0
      %366 = vmatpush1.msra.mxu0 0.0
      %367 = vmatprep.subr.mxu0 0.0
      %368 = vmatpush1.msra.mxu0 0.0
      %369 = vmatprep.subr.mxu0 0.0
      %370 = vmatpush1.msra.mxu0 0.0
      %371 = vmatprep.subr.mxu0 0.0
      %372 = vmatpush1.msra.mxu0 0.0
      %373 = vmatprep.subr.mxu0 0.0
      %374 = vmatpush1.msra.mxu0 0.0
      %375 = vmatprep.subr.mxu0 0.0
      %376 = vmatpush1.msra.mxu0 0.0
      %377 = vmatprep.subr.mxu0 0.0
      %378 = vmatpush1.msra.mxu0 0.0
      %379 = vmatprep.subr.mxu0 0.0
      %380 = vmatpush1.msra.mxu0 0.0
      %381 = vmatprep.subr.mxu0 0.0
      %382 = vmatpush1.msra.mxu0 0.0
      %383 = vmatprep.subr.mxu0 0.0
      %384 = vmatpush1.msra.mxu0 0.0
      %385 = vmatprep.subr.mxu0 0.0
      %386 = vmatpush1.msra.mxu0 0.0
      %387 = vmatprep.subr.mxu0 0.0
      %388 = vmatpush1.msra.mxu0 0.0
      %389 = vmatprep.subr.mxu0 0.0
      %390 = vmatpush1.msra.mxu0 0.0
      %391 = vmatprep.subr.mxu0 0.0
      %392 = vmatpush1.msra.mxu0 0.0
      %393 = vmatprep.subr.mxu0 0.0
      %394 = vmatpush1.msra.mxu0 0.0
      %395 = vmatprep.subr.mxu0 0.0
      %396 = vmatpush1.msra.mxu0 0.0
      %397 = vmatprep.subr.mxu0 0.0
      %398 = vmatpush1.msra.mxu0 0.0
      %399 = vmatprep.subr.mxu0 0.0
      %400 = vmatpush1.msra.mxu0 0.0
      %401 = vmatprep.mubr.f32.mxu0 0.0
      %402 = vmatmul.mubr.f32.gmra.mrb[0].mxu0 %v335
      %v403 = vpop.f32.mrb[0].mxu0
      %v404 = vadd.f32 0.0, %v403
      %v405 = vpop.f32.mrb[0].mxu0
      %406 = vdwg.mxu0
      %v407 = vadd.f32 %v332, %v404
      %v408 = vxor.u32 %v407, 2147483648
      %v409 = vmul.f32 %v408, 1.442695
      %v410 = vpow.pop %v409
      %v411 = vadd.f32 %v410, 1.0
      %v412 = vrcp.pop %v411
      %v413 = vmul.f32 1.0, %v412
      %v414 = vtanh.pop %v407
      %416 = vrot.lane.b32.xlu0 %v329, 32
      %v417 = vpop.permute.xlu0 %416
      %v419 = vmul.f32 %v413, %v417
      %421 = vrot.lane.b32.xlu0 %v414, 64
      %v422 = vpop.permute.xlu0 %421
      %v424 = vmul.f32 %v413, %v422
      %426 = vrot.lane.b32.xlu0 %v424, 32
      %v427 = vpop.permute.xlu0 %426
      %v429 = vadd.f32 %v419, %v427
      %v430 = vtanh.pop %v429
      %432 = vrot.lane.b32.xlu0 %v430, 64
      %v433 = vpop.permute.xlu0 %432
      %v435 = vmul.f32 %v413, %v433
      %437 = vrot.lane.b32.xlu0 %v435, 32
      %v438 = vpop.permute.xlu0 %437
      %s440 = scalar_lea.vmem %s301, %s330
      %vm441 = vcmask 254976
      %442 = vst.msk [vmem:[%s440] sm:$0x3] %vm441, %v438
      %s443 = sadd.s32 %s327, %s326
      %s444 = smul.u32 %s443, 2
      %s445 = scalar_lea.vmem %s280, %s444
      %v446 = vld [vmem:[%s445] sm:$0x3]
      %v447 = vsel %vm333, %v438, 0
      %449 = vmatprep.subr.mxu0 0.0
      %450 = vmatpush1.msra.mxu0 %v321
      %451 = vmatprep.subr.mxu0 0.0
      %452 = vmatpush1.msra.mxu0 %v322
      %453 = vmatprep.subr.mxu0 0.0
      %454 = vmatpush1.msra.mxu0 %v323
      %455 = vmatprep.subr.mxu0 0.0
      %456 = vmatpush1.msra.mxu0 %v324
      %457 = vmatprep.subr.mxu0 0.0
      %458 = vmatpush1.msra.mxu0 0.0
      %459 = vmatprep.subr.mxu0 0.0
      %460 = vmatpush1.msra.mxu0 0.0
      %461 = vmatprep.subr.mxu0 0.0
      %462 = vmatpush1.msra.mxu0 0.0
      %463 = vmatprep.subr.mxu0 0.0
      %464 = vmatpush1.msra.mxu0 0.0
      %465 = vmatprep.subr.mxu0 0.0
      %466 = vmatpush1.msra.mxu0 0.0
      %467 = vmatprep.subr.mxu0 0.0
      %468 = vmatpush1.msra.mxu0 0.0
      %469 = vmatprep.subr.mxu0 0.0
      %470 = vmatpush1.msra.mxu0 0.0
      %471 = vmatprep.subr.mxu0 0.0
      %472 = vmatpush1.msra.mxu0 0.0
      %473 = vmatprep.subr.mxu0 0.0
      %474 = vmatpush1.msra.mxu0 0.0
      %475 = vmatprep.subr.mxu0 0.0
      %476 = vmatpush1.msra.mxu0 0.0
      %477 = vmatprep.subr.mxu0 0.0
      %478 = vmatpush1.msra.mxu0 0.0
      %479 = vmatprep.subr.mxu0 0.0
      %480 = vmatpush1.msra.mxu0 0.0
      %481 = vmatprep.subr.mxu0 0.0
      %482 = vmatpush1.msra.mxu0 0.0
      %483 = vmatprep.subr.mxu0 0.0
      %484 = vmatpush1.msra.mxu0 0.0
      %485 = vmatprep.subr.mxu0 0.0
      %486 = vmatpush1.msra.mxu0 0.0
      %487 = vmatprep.subr.mxu0 0.0
      %488 = vmatpush1.msra.mxu0 0.0
      %489 = vmatprep.subr.mxu0 0.0
      %490 = vmatpush1.msra.mxu0 0.0
      %491 = vmatprep.subr.mxu0 0.0
      %492 = vmatpush1.msra.mxu0 0.0
      %493 = vmatprep.subr.mxu0 0.0
      %494 = vmatpush1.msra.mxu0 0.0
      %495 = vmatprep.subr.mxu0 0.0
      %496 = vmatpush1.msra.mxu0 0.0
      %497 = vmatprep.subr.mxu0 0.0
      %498 = vmatpush1.msra.mxu0 0.0
      %499 = vmatprep.subr.mxu0 0.0
      %500 = vmatpush1.msra.mxu0 0.0
      %501 = vmatprep.subr.mxu0 0.0
      %502 = vmatpush1.msra.mxu0 0.0
      %503 = vmatprep.subr.mxu0 0.0
      %504 = vmatpush1.msra.mxu0 0.0
      %505 = vmatprep.subr.mxu0 0.0
      %506 = vmatpush1.msra.mxu0 0.0
      %507 = vmatprep.subr.mxu0 0.0
      %508 = vmatpush1.msra.mxu0 0.0
      %509 = vmatprep.subr.mxu0 0.0
      %510 = vmatpush1.msra.mxu0 0.0
      %511 = vmatprep.subr.mxu0 0.0
      %512 = vmatpush1.msra.mxu0 0.0
      %513 = vmatprep.mubr.f32.mxu0 0.0
      %514 = vmatmul.mubr.f32.gmra.mrb[0].mxu0 %v447
      %v515 = vpop.f32.mrb[0].mxu0
      %v516 = vadd.f32 0.0, %v515
      %v517 = vpop.f32.mrb[0].mxu0
      %518 = vdwg.mxu0
      %v519 = vadd.f32 %v446, %v516
      %v520 = vxor.u32 %v519, 2147483648
      %v521 = vmul.f32 %v520, 1.442695
      %v522 = vpow.pop %v521
      %v523 = vadd.f32 %v522, 1.0
      %v524 = vrcp.pop %v523
      %v525 = vmul.f32 1.0, %v524
      %v526 = vtanh.pop %v519
      %v527 = vmul.f32 %v525, %v429
      %529 = vrot.lane.b32.xlu0 %v526, 64
      %v530 = vpop.permute.xlu0 %529
      %v532 = vmul.f32 %v525, %v530
      %534 = vrot.lane.b32.xlu0 %v532, 32
      %v535 = vpop.permute.xlu0 %534
      %v537 = vadd.f32 %v527, %v535
      %v538 = vtanh.pop %v537
      %540 = vrot.lane.b32.xlu0 %v538, 64
      %v541 = vpop.permute.xlu0 %540
      %v543 = vmul.f32 %v525, %v541
      %545 = vrot.lane.b32.xlu0 %v543, 32
      %v546 = vpop.permute.xlu0 %545
      %s548 = scalar_lea.vmem %s301, %s444
      %549 = vst.msk [vmem:[%s548] sm:$0x3] %vm441, %v546
      %s550 = smul.u32 %s326, 2
      %s551 = sadd.s32 %s327, %s550
      %s552 = smul.u32 %s551, 2
      %s553 = scalar_lea.vmem %s280, %s552
      %v554 = vld [vmem:[%s553] sm:$0x3]
      %v555 = vsel %vm333, %v546, 0
      %557 = vmatprep.subr.mxu0 0.0
      %558 = vmatpush1.msra.mxu0 %v321
      %559 = vmatprep.subr.mxu0 0.0
      %560 = vmatpush1.msra.mxu0 %v322
      %561 = vmatprep.subr.mxu0 0.0
      %562 = vmatpush1.msra.mxu0 %v323
      %563 = vmatprep.subr.mxu0 0.0
      %564 = vmatpush1.msra.mxu0 %v324
      %565 = vmatprep.subr.mxu0 0.0
      %566 = vmatpush1.msra.mxu0 0.0
      %567 = vmatprep.subr.mxu0 0.0
      %568 = vmatpush1.msra.mxu0 0.0
      %569 = vmatprep.subr.mxu0 0.0
      %570 = vmatpush1.msra.mxu0 0.0
      %571 = vmatprep.subr.mxu0 0.0
      %572 = vmatpush1.msra.mxu0 0.0
      %573 = vmatprep.subr.mxu0 0.0
      %574 = vmatpush1.msra.mxu0 0.0
      %575 = vmatprep.subr.mxu0 0.0
      %576 = vmatpush1.msra.mxu0 0.0
      %577 = vmatprep.subr.mxu0 0.0
      %578 = vmatpush1.msra.mxu0 0.0
      %579 = vmatprep.subr.mxu0 0.0
      %580 = vmatpush1.msra.mxu0 0.0
      %581 = vmatprep.subr.mxu0 0.0
      %582 = vmatpush1.msra.mxu0 0.0
      %583 = vmatprep.subr.mxu0 0.0
      %584 = vmatpush1.msra.mxu0 0.0
      %585 = vmatprep.subr.mxu0 0.0
      %586 = vmatpush1.msra.mxu0 0.0
      %587 = vmatprep.subr.mxu0 0.0
      %588 = vmatpush1.msra.mxu0 0.0
      %589 = vmatprep.subr.mxu0 0.0
      %590 = vmatpush1.msra.mxu0 0.0
      %591 = vmatprep.subr.mxu0 0.0
      %592 = vmatpush1.msra.mxu0 0.0
      %593 = vmatprep.subr.mxu0 0.0
      %594 = vmatpush1.msra.mxu0 0.0
      %595 = vmatprep.subr.mxu0 0.0
      %596 = vmatpush1.msra.mxu0 0.0
      %597 = vmatprep.subr.mxu0 0.0
      %598 = vmatpush1.msra.mxu0 0.0
      %599 = vmatprep.subr.mxu0 0.0
      %600 = vmatpush1.msra.mxu0 0.0
      %601 = vmatprep.subr.mxu0 0.0
      %602 = vmatpush1.msra.mxu0 0.0
      %603 = vmatprep.subr.mxu0 0.0
      %604 = vmatpush1.msra.mxu0 0.0
      %605 = vmatprep.subr.mxu0 0.0
      %606 = vmatpush1.msra.mxu0 0.0
      %607 = vmatprep.subr.mxu0 0.0
      %608 = vmatpush1.msra.mxu0 0.0
      %609 = vmatprep.subr.mxu0 0.0
      %610 = vmatpush1.msra.mxu0 0.0
      %611 = vmatprep.subr.mxu0 0.0
      %612 = vmatpush1.msra.mxu0 0.0
      %613 = vmatprep.subr.mxu0 0.0
      %614 = vmatpush1.msra.mxu0 0.0
      %615 = vmatprep.subr.mxu0 0.0
      %616 = vmatpush1.msra.mxu0 0.0
      %617 = vmatprep.subr.mxu0 0.0
      %618 = vmatpush1.msra.mxu0 0.0
      %619 = vmatprep.subr.mxu0 0.0
      %620 = vmatpush1.msra.mxu0 0.0
      %621 = vmatprep.mubr.f32.mxu0 0.0
      %622 = vmatmul.mubr.f32.gmra.mrb[0].mxu0 %v555
      %v623 = vpop.f32.mrb[0].mxu0
      %v624 = vadd.f32 0.0, %v623
      %v625 = vpop.f32.mrb[0].mxu0
      %626 = vdwg.mxu0
      %v627 = vadd.f32 %v554, %v624
      %v628 = vxor.u32 %v627, 2147483648
      %v629 = vmul.f32 %v628, 1.442695
      %v630 = vpow.pop %v629
      %v631 = vadd.f32 %v630, 1.0
      %v632 = vrcp.pop %v631
      %v633 = vmul.f32 1.0, %v632
      %v634 = vtanh.pop %v627
      %v635 = vmul.f32 %v633, %v537
      %637 = vrot.lane.b32.xlu0 %v634, 64
      %v638 = vpop.permute.xlu0 %637
      %v640 = vmul.f32 %v633, %v638
      %642 = vrot.lane.b32.xlu0 %v640, 32
      %v643 = vpop.permute.xlu0 %642
      %v645 = vadd.f32 %v635, %v643
      %v646 = vtanh.pop %v645
      %648 = vrot.lane.b32.xlu0 %v646, 64
      %v649 = vpop.permute.xlu0 %648
      %v651 = vmul.f32 %v633, %v649
      %653 = vrot.lane.b32.xlu0 %v651, 32
      %v654 = vpop.permute.xlu0 %653
      %s656 = scalar_lea.vmem %s301, %s552
      %657 = vst.msk [vmem:[%s656] sm:$0x3] %vm441, %v654
      %s658 = smul.u32 %s326, 3
      %s659 = sadd.s32 %s327, %s658
      %s660 = smul.u32 %s659, 2
      %s661 = scalar_lea.vmem %s280, %s660
      %v662 = vld [vmem:[%s661] sm:$0x3]
      %v663 = vsel %vm333, %v654, 0
      %665 = vmatprep.subr.mxu0 0.0
      %666 = vmatpush1.msra.mxu0 %v321
      %667 = vmatprep.subr.mxu0 0.0
      %668 = vmatpush1.msra.mxu0 %v322
      %669 = vmatprep.subr.mxu0 0.0
      %670 = vmatpush1.msra.mxu0 %v323
      %671 = vmatprep.subr.mxu0 0.0
      %672 = vmatpush1.msra.mxu0 %v324
      %673 = vmatprep.subr.mxu0 0.0
      %674 = vmatpush1.msra.mxu0 0.0
      %675 = vmatprep.subr.mxu0 0.0
      %676 = vmatpush1.msra.mxu0 0.0
      %677 = vmatprep.subr.mxu0 0.0
      %678 = vmatpush1.msra.mxu0 0.0
      %679 = vmatprep.subr.mxu0 0.0
      %680 = vmatpush1.msra.mxu0 0.0
      %681 = vmatprep.subr.mxu0 0.0
      %682 = vmatpush1.msra.mxu0 0.0
      %683 = vmatprep.subr.mxu0 0.0
      %684 = vmatpush1.msra.mxu0 0.0
      %685 = vmatprep.subr.mxu0 0.0
      %686 = vmatpush1.msra.mxu0 0.0
      %687 = vmatprep.subr.mxu0 0.0
      %688 = vmatpush1.msra.mxu0 0.0
      %689 = vmatprep.subr.mxu0 0.0
      %690 = vmatpush1.msra.mxu0 0.0
      %691 = vmatprep.subr.mxu0 0.0
      %692 = vmatpush1.msra.mxu0 0.0
      %693 = vmatprep.subr.mxu0 0.0
      %694 = vmatpush1.msra.mxu0 0.0
      %695 = vmatprep.subr.mxu0 0.0
      %696 = vmatpush1.msra.mxu0 0.0
      %697 = vmatprep.subr.mxu0 0.0
      %698 = vmatpush1.msra.mxu0 0.0
      %699 = vmatprep.subr.mxu0 0.0
      %700 = vmatpush1.msra.mxu0 0.0
      %701 = vmatprep.subr.mxu0 0.0
      %702 = vmatpush1.msra.mxu0 0.0
      %703 = vmatprep.subr.mxu0 0.0
      %704 = vmatpush1.msra.mxu0 0.0
      %705 = vmatprep.subr.mxu0 0.0
      %706 = vmatpush1.msra.mxu0 0.0
      %707 = vmatprep.subr.mxu0 0.0
      %708 = vmatpush1.msra.mxu0 0.0
      %709 = vmatprep.subr.mxu0 0.0
      %710 = vmatpush1.msra.mxu0 0.0
      %711 = vmatprep.subr.mxu0 0.0
      %712 = vmatpush1.msra.mxu0 0.0
      %713 = vmatprep.subr.mxu0 0.0
      %714 = vmatpush1.msra.mxu0 0.0
      %715 = vmatprep.subr.mxu0 0.0
      %716 = vmatpush1.msra.mxu0 0.0
      %717 = vmatprep.subr.mxu0 0.0
      %718 = vmatpush1.msra.mxu0 0.0
      %719 = vmatprep.subr.mxu0 0.0
      %720 = vmatpush1.msra.mxu0 0.0
      %721 = vmatprep.subr.mxu0 0.0
      %722 = vmatpush1.msra.mxu0 0.0
      %723 = vmatprep.subr.mxu0 0.0
      %724 = vmatpush1.msra.mxu0 0.0
      %725 = vmatprep.subr.mxu0 0.0
      %726 = vmatpush1.msra.mxu0 0.0
      %727 = vmatprep.subr.mxu0 0.0
      %728 = vmatpush1.msra.mxu0 0.0
      %729 = vmatprep.mubr.f32.mxu0 0.0
      %730 = vmatmul.mubr.f32.gmra.mrb[0].mxu0 %v663
      %v731 = vpop.f32.mrb[0].mxu0
      %v732 = vadd.f32 0.0, %v731
      %v733 = vpop.f32.mrb[0].mxu0
      %734 = vdwg.mxu0
      %v735 = vadd.f32 %v662, %v732
      %v736 = vxor.u32 %v735, 2147483648
      %v737 = vmul.f32 %v736, 1.442695
      %v738 = vpow.pop %v737
      %v739 = vadd.f32 %v738, 1.0
      %v740 = vrcp.pop %v739
      %v741 = vmul.f32 1.0, %v740
      %v742 = vtanh.pop %v735
      %v743 = vmul.f32 %v741, %v645
      %745 = vrot.lane.b32.xlu0 %v742, 64
      %v746 = vpop.permute.xlu0 %745
      %v748 = vmul.f32 %v741, %v746
      %750 = vrot.lane.b32.xlu0 %v748, 32
      %v751 = vpop.permute.xlu0 %750
      %v753 = vadd.f32 %v743, %v751
      %v754 = vtanh.pop %v753
      %756 = vrot.lane.b32.xlu0 %v754, 64
      %v757 = vpop.permute.xlu0 %756
      %v759 = vmul.f32 %v741, %v757
      %761 = vrot.lane.b32.xlu0 %v759, 32
      %v762 = vpop.permute.xlu0 %761
      %s764 = scalar_lea.vmem %s301, %s660
      %765 = vst.msk [vmem:[%s764] sm:$0x3] %vm441, %v762
      %s766 = smul.u32 %s326, 4
      %s767 = sadd.s32 %s327, %s766
      %s768 = smul.u32 %s767, 2
      %s769 = scalar_lea.vmem %s280, %s768
      %v770 = vld [vmem:[%s769] sm:$0x3]
      %v771 = vsel %vm333, %v762, 0
      %773 = vmatprep.subr.mxu0 0.0
      %774 = vmatpush1.msra.mxu0 %v321
      %775 = vmatprep.subr.mxu0 0.0
      %776 = vmatpush1.msra.mxu0 %v322
      %777 = vmatprep.subr.mxu0 0.0
      %778 = vmatpush1.msra.mxu0 %v323
      %779 = vmatprep.subr.mxu0 0.0
      %780 = vmatpush1.msra.mxu0 %v324
      %781 = vmatprep.subr.mxu0 0.0
      %782 = vmatpush1.msra.mxu0 0.0
      %783 = vmatprep.subr.mxu0 0.0
      %784 = vmatpush1.msra.mxu0 0.0
      %785 = vmatprep.subr.mxu0 0.0
      %786 = vmatpush1.msra.mxu0 0.0
      %787 = vmatprep.subr.mxu0 0.0
      %788 = vmatpush1.msra.mxu0 0.0
      %789 = vmatprep.subr.mxu0 0.0
      %790 = vmatpush1.msra.mxu0 0.0
      %791 = vmatprep.subr.mxu0 0.0
      %792 = vmatpush1.msra.mxu0 0.0
      %793 = vmatprep.subr.mxu0 0.0
      %794 = vmatpush1.msra.mxu0 0.0
      %795 = vmatprep.subr.mxu0 0.0
      %796 = vmatpush1.msra.mxu0 0.0
      %797 = vmatprep.subr.mxu0 0.0
      %798 = vmatpush1.msra.mxu0 0.0
      %799 = vmatprep.subr.mxu0 0.0
      %800 = vmatpush1.msra.mxu0 0.0
      %801 = vmatprep.subr.mxu0 0.0
      %802 = vmatpush1.msra.mxu0 0.0
      %803 = vmatprep.subr.mxu0 0.0
      %804 = vmatpush1.msra.mxu0 0.0
      %805 = vmatprep.subr.mxu0 0.0
      %806 = vmatpush1.msra.mxu0 0.0
      %807 = vmatprep.subr.mxu0 0.0
      %808 = vmatpush1.msra.mxu0 0.0
      %809 = vmatprep.subr.mxu0 0.0
      %810 = vmatpush1.msra.mxu0 0.0
      %811 = vmatprep.subr.mxu0 0.0
      %812 = vmatpush1.msra.mxu0 0.0
      %813 = vmatprep.subr.mxu0 0.0
      %814 = vmatpush1.msra.mxu0 0.0
      %815 = vmatprep.subr.mxu0 0.0
      %816 = vmatpush1.msra.mxu0 0.0
      %817 = vmatprep.subr.mxu0 0.0
      %818 = vmatpush1.msra.mxu0 0.0
      %819 = vmatprep.subr.mxu0 0.0
      %820 = vmatpush1.msra.mxu0 0.0
      %821 = vmatprep.subr.mxu0 0.0
      %822 = vmatpush1.msra.mxu0 0.0
      %823 = vmatprep.subr.mxu0 0.0
      %824 = vmatpush1.msra.mxu0 0.0
      %825 = vmatprep.subr.mxu0 0.0
      %826 = vmatpush1.msra.mxu0 0.0
      %827 = vmatprep.subr.mxu0 0.0
      %828 = vmatpush1.msra.mxu0 0.0
      %829 = vmatprep.subr.mxu0 0.0
      %830 = vmatpush1.msra.mxu0 0.0
      %831 = vmatprep.subr.mxu0 0.0
      %832 = vmatpush1.msra.mxu0 0.0
      %833 = vmatprep.subr.mxu0 0.0
      %834 = vmatpush1.msra.mxu0 0.0
      %835 = vmatprep.subr.mxu0 0.0
      %836 = vmatpush1.msra.mxu0 0.0
      %837 = vmatprep.mubr.f32.mxu0 0.0
      %838 = vmatmul.mubr.f32.gmra.mrb[0].mxu0 %v771
      %v839 = vpop.f32.mrb[0].mxu0
      %v840 = vadd.f32 0.0, %v839
      %v841 = vpop.f32.mrb[0].mxu0
      %842 = vdwg.mxu0
      %v843 = vadd.f32 %v770, %v840
      %v844 = vxor.u32 %v843, 2147483648
      %v845 = vmul.f32 %v844, 1.442695
      %v846 = vpow.pop %v845
      %v847 = vadd.f32 %v846, 1.0
      %v848 = vrcp.pop %v847
      %v849 = vmul.f32 1.0, %v848
      %v850 = vtanh.pop %v843
      %v851 = vmul.f32 %v849, %v753
      %853 = vrot.lane.b32.xlu0 %v850, 64
      %v854 = vpop.permute.xlu0 %853
      %v856 = vmul.f32 %v849, %v854
      %858 = vrot.lane.b32.xlu0 %v856, 32
      %v859 = vpop.permute.xlu0 %858
      %v861 = vadd.f32 %v851, %v859
      %v862 = vtanh.pop %v861
      %864 = vrot.lane.b32.xlu0 %v862, 64
      %v865 = vpop.permute.xlu0 %864
      %v867 = vmul.f32 %v849, %v865
      %869 = vrot.lane.b32.xlu0 %v867, 32
      %v870 = vpop.permute.xlu0 %869
      %s872 = scalar_lea.vmem %s301, %s768
      %873 = vst.msk [vmem:[%s872] sm:$0x3] %vm441, %v870
      %s874 = smul.u32 %s326, 5
      %s875 = sadd.s32 %s327, %s874
      %s876 = smul.u32 %s875, 2
      %s877 = scalar_lea.vmem %s280, %s876
      %v878 = vld [vmem:[%s877] sm:$0x3]
      %v879 = vsel %vm333, %v870, 0
      %881 = vmatprep.subr.mxu0 0.0
      %882 = vmatpush1.msra.mxu0 %v321
      %883 = vmatprep.subr.mxu0 0.0
      %884 = vmatpush1.msra.mxu0 %v322
      %885 = vmatprep.subr.mxu0 0.0
      %886 = vmatpush1.msra.mxu0 %v323
      %887 = vmatprep.subr.mxu0 0.0
      %888 = vmatpush1.msra.mxu0 %v324
      %889 = vmatprep.subr.mxu0 0.0
      %890 = vmatpush1.msra.mxu0 0.0
      %891 = vmatprep.subr.mxu0 0.0
      %892 = vmatpush1.msra.mxu0 0.0
      %893 = vmatprep.subr.mxu0 0.0
      %894 = vmatpush1.msra.mxu0 0.0
      %895 = vmatprep.subr.mxu0 0.0
      %896 = vmatpush1.msra.mxu0 0.0
      %897 = vmatprep.subr.mxu0 0.0
      %898 = vmatpush1.msra.mxu0 0.0
      %899 = vmatprep.subr.mxu0 0.0
      %900 = vmatpush1.msra.mxu0 0.0
      %901 = vmatprep.subr.mxu0 0.0
      %902 = vmatpush1.msra.mxu0 0.0
      %903 = vmatprep.subr.mxu0 0.0
      %904 = vmatpush1.msra.mxu0 0.0
      %905 = vmatprep.subr.mxu0 0.0
      %906 = vmatpush1.msra.mxu0 0.0
      %907 = vmatprep.subr.mxu0 0.0
      %908 = vmatpush1.msra.mxu0 0.0
      %909 = vmatprep.subr.mxu0 0.0
      %910 = vmatpush1.msra.mxu0 0.0
      %911 = vmatprep.subr.mxu0 0.0
      %912 = vmatpush1.msra.mxu0 0.0
      %913 = vmatprep.subr.mxu0 0.0
      %914 = vmatpush1.msra.mxu0 0.0
      %915 = vmatprep.subr.mxu0 0.0
      %916 = vmatpush1.msra.mxu0 0.0
      %917 = vmatprep.subr.mxu0 0.0
      %918 = vmatpush1.msra.mxu0 0.0
      %919 = vmatprep.subr.mxu0 0.0
      %920 = vmatpush1.msra.mxu0 0.0
      %921 = vmatprep.subr.mxu0 0.0
      %922 = vmatpush1.msra.mxu0 0.0
      %923 = vmatprep.subr.mxu0 0.0
      %924 = vmatpush1.msra.mxu0 0.0
      %925 = vmatprep.subr.mxu0 0.0
      %926 = vmatpush1.msra.mxu0 0.0
      %927 = vmatprep.subr.mxu0 0.0
      %928 = vmatpush1.msra.mxu0 0.0
      %929 = vmatprep.subr.mxu0 0.0
      %930 = vmatpush1.msra.mxu0 0.0
      %931 = vmatprep.subr.mxu0 0.0
      %932 = vmatpush1.msra.mxu0 0.0
      %933 = vmatprep.subr.mxu0 0.0
      %934 = vmatpush1.msra.mxu0 0.0
      %935 = vmatprep.subr.mxu0 0.0
      %936 = vmatpush1.msra.mxu0 0.0
      %937 = vmatprep.subr.mxu0 0.0
      %938 = vmatpush1.msra.mxu0 0.0
      %939 = vmatprep.subr.mxu0 0.0
      %940 = vmatpush1.msra.mxu0 0.0
      %941 = vmatprep.subr.mxu0 0.0
      %942 = vmatpush1.msra.mxu0 0.0
      %943 = vmatprep.subr.mxu0 0.0
      %944 = vmatpush1.msra.mxu0 0.0
      %945 = vmatprep.mubr.f32.mxu0 0.0
      %946 = vmatmul.mubr.f32.gmra.mrb[0].mxu0 %v879
      %v947 = vpop.f32.mrb[0].mxu0
      %v948 = vadd.f32 0.0, %v947
      %v949 = vpop.f32.mrb[0].mxu0
      %950 = vdwg.mxu0
      %v951 = vadd.f32 %v878, %v948
      %v952 = vxor.u32 %v951, 2147483648
      %v953 = vmul.f32 %v952, 1.442695
      %v954 = vpow.pop %v953
      %v955 = vadd.f32 %v954, 1.0
      %v956 = vrcp.pop %v955
      %v957 = vmul.f32 1.0, %v956
      %v958 = vtanh.pop %v951
      %v959 = vmul.f32 %v957, %v861
      %961 = vrot.lane.b32.xlu0 %v958, 64
      %v962 = vpop.permute.xlu0 %961
      %v964 = vmul.f32 %v957, %v962
      %966 = vrot.lane.b32.xlu0 %v964, 32
      %v967 = vpop.permute.xlu0 %966
      %v969 = vadd.f32 %v959, %v967
      %v970 = vtanh.pop %v969
      %972 = vrot.lane.b32.xlu0 %v970, 64
      %v973 = vpop.permute.xlu0 %972
      %v975 = vmul.f32 %v957, %v973
      %977 = vrot.lane.b32.xlu0 %v975, 32
      %v978 = vpop.permute.xlu0 %977
      %s980 = scalar_lea.vmem %s301, %s876
      %981 = vst.msk [vmem:[%s980] sm:$0x3] %vm441, %v978
      %s982 = smul.u32 %s326, 6
      %s983 = sadd.s32 %s327, %s982
      %s984 = smul.u32 %s983, 2
      %s985 = scalar_lea.vmem %s280, %s984
      %v986 = vld [vmem:[%s985] sm:$0x3]
      %v987 = vsel %vm333, %v978, 0
      %989 = vmatprep.subr.mxu0 0.0
      %990 = vmatpush1.msra.mxu0 %v321
      %991 = vmatprep.subr.mxu0 0.0
      %992 = vmatpush1.msra.mxu0 %v322
      %993 = vmatprep.subr.mxu0 0.0
      %994 = vmatpush1.msra.mxu0 %v323
      %995 = vmatprep.subr.mxu0 0.0
      %996 = vmatpush1.msra.mxu0 %v324
      %997 = vmatprep.subr.mxu0 0.0
      %998 = vmatpush1.msra.mxu0 0.0
      %999 = vmatprep.subr.mxu0 0.0
      %1000 = vmatpush1.msra.mxu0 0.0
      %1001 = vmatprep.subr.mxu0 0.0
      %1002 = vmatpush1.msra.mxu0 0.0
      %1003 = vmatprep.subr.mxu0 0.0
      %1004 = vmatpush1.msra.mxu0 0.0
      %1005 = vmatprep.subr.mxu0 0.0
      %1006 = vmatpush1.msra.mxu0 0.0
      %1007 = vmatprep.subr.mxu0 0.0
      %1008 = vmatpush1.msra.mxu0 0.0
      %1009 = vmatprep.subr.mxu0 0.0
      %1010 = vmatpush1.msra.mxu0 0.0
      %1011 = vmatprep.subr.mxu0 0.0
      %1012 = vmatpush1.msra.mxu0 0.0
      %1013 = vmatprep.subr.mxu0 0.0
      %1014 = vmatpush1.msra.mxu0 0.0
      %1015 = vmatprep.subr.mxu0 0.0
      %1016 = vmatpush1.msra.mxu0 0.0
      %1017 = vmatprep.subr.mxu0 0.0
      %1018 = vmatpush1.msra.mxu0 0.0
      %1019 = vmatprep.subr.mxu0 0.0
      %1020 = vmatpush1.msra.mxu0 0.0
      %1021 = vmatprep.subr.mxu0 0.0
      %1022 = vmatpush1.msra.mxu0 0.0
      %1023 = vmatprep.subr.mxu0 0.0
      %1024 = vmatpush1.msra.mxu0 0.0
      %1025 = vmatprep.subr.mxu0 0.0
      %1026 = vmatpush1.msra.mxu0 0.0
      %1027 = vmatprep.subr.mxu0 0.0
      %1028 = vmatpush1.msra.mxu0 0.0
      %1029 = vmatprep.subr.mxu0 0.0
      %1030 = vmatpush1.msra.mxu0 0.0
      %1031 = vmatprep.subr.mxu0 0.0
      %1032 = vmatpush1.msra.mxu0 0.0
      %1033 = vmatprep.subr.mxu0 0.0
      %1034 = vmatpush1.msra.mxu0 0.0
      %1035 = vmatprep.subr.mxu0 0.0
      %1036 = vmatpush1.msra.mxu0 0.0
      %1037 = vmatprep.subr.mxu0 0.0
      %1038 = vmatpush1.msra.mxu0 0.0
      %1039 = vmatprep.subr.mxu0 0.0
      %1040 = vmatpush1.msra.mxu0 0.0
      %1041 = vmatprep.subr.mxu0 0.0
      %1042 = vmatpush1.msra.mxu0 0.0
      %1043 = vmatprep.subr.mxu0 0.0
      %1044 = vmatpush1.msra.mxu0 0.0
      %1045 = vmatprep.subr.mxu0 0.0
      %1046 = vmatpush1.msra.mxu0 0.0
      %1047 = vmatprep.subr.mxu0 0.0
      %1048 = vmatpush1.msra.mxu0 0.0
      %1049 = vmatprep.subr.mxu0 0.0
      %1050 = vmatpush1.msra.mxu0 0.0
      %1051 = vmatprep.subr.mxu0 0.0
      %1052 = vmatpush1.msra.mxu0 0.0
      %1053 = vmatprep.mubr.f32.mxu0 0.0
      %1054 = vmatmul.mubr.f32.gmra.mrb[0].mxu0 %v987
      %v1055 = vpop.f32.mrb[0].mxu0
      %v1056 = vadd.f32 0.0, %v1055
      %v1057 = vpop.f32.mrb[0].mxu0
      %1058 = vdwg.mxu0
      %v1059 = vadd.f32 %v986, %v1056
      %v1060 = vxor.u32 %v1059, 2147483648
      %v1061 = vmul.f32 %v1060, 1.442695
      %v1062 = vpow.pop %v1061
      %v1063 = vadd.f32 %v1062, 1.0
      %v1064 = vrcp.pop %v1063
      %v1065 = vmul.f32 1.0, %v1064
      %v1066 = vtanh.pop %v1059
      %v1067 = vmul.f32 %v1065, %v969
      %1069 = vrot.lane.b32.xlu0 %v1066, 64
      %v1070 = vpop.permute.xlu0 %1069
      %v1072 = vmul.f32 %v1065, %v1070
      %1074 = vrot.lane.b32.xlu0 %v1072, 32
      %v1075 = vpop.permute.xlu0 %1074
      %v1077 = vadd.f32 %v1067, %v1075
      %v1078 = vtanh.pop %v1077
      %1080 = vrot.lane.b32.xlu0 %v1078, 64
      %v1081 = vpop.permute.xlu0 %1080
      %v1083 = vmul.f32 %v1065, %v1081
      %1085 = vrot.lane.b32.xlu0 %v1083, 32
      %v1086 = vpop.permute.xlu0 %1085
      %s1088 = scalar_lea.vmem %s301, %s984
      %1089 = vst.msk [vmem:[%s1088] sm:$0x3] %vm441, %v1086
      %s1090 = smul.u32 %s326, 7
      %s1091 = sadd.s32 %s327, %s1090
      %s1092 = smul.u32 %s1091, 2
      %s1093 = scalar_lea.vmem %s280, %s1092
      %v1094 = vld [vmem:[%s1093] sm:$0x3]
      %v1095 = vsel %vm333, %v1086, 0
      %1097 = vmatprep.subr.mxu0 0.0
      %1098 = vmatpush1.msra.mxu0 %v321
      %1099 = vmatprep.subr.mxu0 0.0
      %1100 = vmatpush1.msra.mxu0 %v322
      %1101 = vmatprep.subr.mxu0 0.0
      %1102 = vmatpush1.msra.mxu0 %v323
      %1103 = vmatprep.subr.mxu0 0.0
      %1104 = vmatpush1.msra.mxu0 %v324
      %1105 = vmatprep.subr.mxu0 0.0
      %1106 = vmatpush1.msra.mxu0 0.0
      %1107 = vmatprep.subr.mxu0 0.0
      %1108 = vmatpush1.msra.mxu0 0.0
      %1109 = vmatprep.subr.mxu0 0.0
      %1110 = vmatpush1.msra.mxu0 0.0
      %1111 = vmatprep.subr.mxu0 0.0
      %1112 = vmatpush1.msra.mxu0 0.0
      %1113 = vmatprep.subr.mxu0 0.0
      %1114 = vmatpush1.msra.mxu0 0.0
      %1115 = vmatprep.subr.mxu0 0.0
      %1116 = vmatpush1.msra.mxu0 0.0
      %1117 = vmatprep.subr.mxu0 0.0
      %1118 = vmatpush1.msra.mxu0 0.0
      %1119 = vmatprep.subr.mxu0 0.0
      %1120 = vmatpush1.msra.mxu0 0.0
      %1121 = vmatprep.subr.mxu0 0.0
      %1122 = vmatpush1.msra.mxu0 0.0
      %1123 = vmatprep.subr.mxu0 0.0
      %1124 = vmatpush1.msra.mxu0 0.0
      %1125 = vmatprep.subr.mxu0 0.0
      %1126 = vmatpush1.msra.mxu0 0.0
      %1127 = vmatprep.subr.mxu0 0.0
      %1128 = vmatpush1.msra.mxu0 0.0
      %1129 = vmatprep.subr.mxu0 0.0
      %1130 = vmatpush1.msra.mxu0 0.0
      %1131 = vmatprep.subr.mxu0 0.0
      %1132 = vmatpush1.msra.mxu0 0.0
      %1133 = vmatprep.subr.mxu0 0.0
      %1134 = vmatpush1.msra.mxu0 0.0
      %1135 = vmatprep.subr.mxu0 0.0
      %1136 = vmatpush1.msra.mxu0 0.0
      %1137 = vmatprep.subr.mxu0 0.0
      %1138 = vmatpush1.msra.mxu0 0.0
      %1139 = vmatprep.subr.mxu0 0.0
      %1140 = vmatpush1.msra.mxu0 0.0
      %1141 = vmatprep.subr.mxu0 0.0
      %1142 = vmatpush1.msra.mxu0 0.0
      %1143 = vmatprep.subr.mxu0 0.0
      %1144 = vmatpush1.msra.mxu0 0.0
      %1145 = vmatprep.subr.mxu0 0.0
      %1146 = vmatpush1.msra.mxu0 0.0
      %1147 = vmatprep.subr.mxu0 0.0
      %1148 = vmatpush1.msra.mxu0 0.0
      %1149 = vmatprep.subr.mxu0 0.0
      %1150 = vmatpush1.msra.mxu0 0.0
      %1151 = vmatprep.subr.mxu0 0.0
      %1152 = vmatpush1.msra.mxu0 0.0
      %1153 = vmatprep.subr.mxu0 0.0
      %1154 = vmatpush1.msra.mxu0 0.0
      %1155 = vmatprep.subr.mxu0 0.0
      %1156 = vmatpush1.msra.mxu0 0.0
      %1157 = vmatprep.subr.mxu0 0.0
      %1158 = vmatpush1.msra.mxu0 0.0
      %1159 = vmatprep.subr.mxu0 0.0
      %1160 = vmatpush1.msra.mxu0 0.0
      %1161 = vmatprep.mubr.f32.mxu0 0.0
      %1162 = vmatmul.mubr.f32.gmra.mrb[0].mxu0 %v1095
      %v1163 = vpop.f32.mrb[0].mxu0
      %v1164 = vadd.f32 0.0, %v1163
      %v1165 = vpop.f32.mrb[0].mxu0
      %1166 = vdwg.mxu0
      %v1167 = vadd.f32 %v1094, %v1164
      %v1168 = vxor.u32 %v1167, 2147483648
      %v1169 = vmul.f32 %v1168, 1.442695
      %v1170 = vpow.pop %v1169
      %v1171 = vadd.f32 %v1170, 1.0
      %v1172 = vrcp.pop %v1171
      %v1173 = vmul.f32 1.0, %v1172
      %v1174 = vtanh.pop %v1167
      %v1175 = vmul.f32 %v1173, %v1077
      %1177 = vrot.lane.b32.xlu0 %v1174, 64
      %v1178 = vpop.permute.xlu0 %1177
      %v1180 = vmul.f32 %v1173, %v1178
      %1182 = vrot.lane.b32.xlu0 %v1180, 32
      %v1183 = vpop.permute.xlu0 %1182
      %v1185 = vadd.f32 %v1175, %v1183
      %v1186 = vtanh.pop %v1185
      %1188 = vrot.lane.b32.xlu0 %v1186, 64
      %v1189 = vpop.permute.xlu0 %1188
      %v1191 = vmul.f32 %v1173, %v1189
      %1193 = vrot.lane.b32.xlu0 %v1191, 32
      %v1194 = vpop.permute.xlu0 %1193
      %s1196 = scalar_lea.vmem %s301, %s1092
      %1197 = vst.msk [vmem:[%s1196] sm:$0x3] %vm441, %v1194
      %1198 = vst.msk [vmem:[#allocation2] sm:$0x3] %vm441, %v1194
      %1200 = vrot.lane.b32.xlu0 %v1185, 96
      %v1201 = vpop.permute.xlu0 %1200
      %1203 = vst.msk [vmem:[#allocation3] sm:$0x3] %vm441, %v1201
      // Predicated region
      $region33: #{encoder_forward.2} parent=27 // pred_check
        %p1204 = pneg %p314
      $region34: #{encoder_forward.2} parent=27 // pred_check_branch
        %1206 = sbr.rel (%p1204) target = $region36
      $region35: #{encoder_forward.2} parent=27 // pred_region
        %1207 = vst.msk [vmem:[%s309] sm:$0x3] %vm441, %v1194
        %1208 = vst.msk [vmem:[%s313] sm:$0x3] %vm441, %v1201
      $region36: #{encoder_forward.2} parent=27 // pred_fallthru
        _
      %s1209 = smul.u32 %s20, 2
      %s1210 = ssub.s32 1, %s1209
      %s1211 = smul.u32 %s1210, %s21
      %s1212 = smul.u32 8, %s1211
      %p1213 = scmp.lt.s32.totalorder %s20, 1
      %s1214 = scalar_select %p1213, %s20, 1
      %p1215 = scmp.lt.s32.totalorder %s1212, 7
      %s1216 = scalar_select %p1215, %s1212, 7
      %s1217 = smul.addr %s1214, 8
      %s1218 = sadd.s32 %s1216, %s1217
      %s1219 = smul.addr %s1218, 2
      %s1220 = scalar_lea.vmem %s2, %s1219
      %p1221 = scmp.lt.s32.totalorder %s20, 1
      %s1222 = scalar_select %p1221, %s20, 1
      %s1223 = smul.addr %s1222, 2
      %s1224 = scalar_lea.vmem %s3, %s1223
      %p1225 = scmp.lt.s32.totalorder %s20, 1
      %s1226 = scalar_select %p1225, %s20, 1
      %s1227 = smul.addr %s1226, 2
      %s1228 = scalar_lea.vmem %s4, %s1227
      // Predicated region
      $region37: #{encoder_forward.2} parent=27 // pred_check
        %p1229 = pneg %p114
      $region38: #{encoder_forward.2} parent=27 // pred_check_branch
        %1231 = sbr.rel (%p1229) target = $region40
      $region39: #{encoder_forward.2} parent=27 // pred_region
        %s1232 = smul.u32 %s20, 2
        %s1233 = ssub.s32 1, %s1232
        %s1234 = smul.u32 %s1233, %s21
        %s1235 = smul.u32 8, %s1234
      $region40: #{encoder_forward.2} parent=27 // pred_fallthru
        _
      // Predicated region
      $region41: #{encoder_forward.2} parent=27 // pred_check
        %p1236 = pneg %p140
      $region42: #{encoder_forward.2} parent=27 // pred_check_branch
        %1238 = sbr.rel (%p1236) target = $region44
      $region43: #{encoder_forward.2} parent=27 // pred_region
        _
      $region44: #{encoder_forward.2} parent=27 // pred_fallthru
        _
      // Predicated region
      $region45: #{encoder_forward.2} parent=27 // pred_check
        %p1239 = pneg %p166
      $region46: #{encoder_forward.2} parent=27 // pred_check_branch
        %1241 = sbr.rel (%p1239) target = $region48
      $region47: #{encoder_forward.2} parent=27 // pred_region
        _
      $region48: #{encoder_forward.2} parent=27 // pred_fallthru
        _
    $region28: #{encoder_forward.2} parent=5 // pred_fallthru
      _
    %p1242 = scmp.le.s32.totalorder 2, %s11
    // Predicated region
    $region49: #{encoder_forward.2} parent=5 // pred_check
      %p1243 = pneg %p1242
    $region50: #{encoder_forward.2} parent=5 // pred_check_branch
      %1245 = sbr.rel (%p1243) target = $region52
    $region51: #{encoder_forward.2} parent=5 // pred_region
      %s1246 = ssub.s32 %s11, 2
      // Predicated region
      $region53: #{encoder_forward.2} parent=51 // pred_check
        %p1247 = pneg %p120
      $region54: #{encoder_forward.2} parent=51 // pred_check_branch
        %1249 = sbr.rel (%p1247) target = $region56
      $region55: #{encoder_forward.2} parent=51 // pred_region
        %s1250 = smul.u32 %s22, 2
        %s1251 = ssub.s32 1, %s1250
        %s1252 = smul.u32 %s1251, %s23
        %s1253 = smul.u32 8, %s1252
        %p1254 = scmp.lt.s32.totalorder %s22, 1
        %s1255 = scalar_select %p1254, %s22, 1
        %p1256 = scmp.lt.s32.totalorder %s1253, 7
        %s1257 = scalar_select %p1256, %s1253, 7
        %s1258 = smul.addr %s1255, 8
        %s1259 = sadd.s32 %s1257, %s1258
        %s1260 = smul.addr %s1259, 2
        %s1261 = scalar_lea.vmem %s2, %s1260
      $region56: #{encoder_forward.2} parent=51 // pred_fallthru
        _
      // Predicated region
      $region57: #{encoder_forward.2} parent=51 // pred_check
        %p1262 = pneg %p146
      $region58: #{encoder_forward.2} parent=51 // pred_check_branch
        %1264 = sbr.rel (%p1262) target = $region60
      $region59: #{encoder_forward.2} parent=51 // pred_region
        %p1265 = scmp.lt.s32.totalorder %s22, 1
        %s1266 = scalar_select %p1265, %s22, 1
        %s1267 = smul.addr %s1266, 2
        %s1268 = scalar_lea.vmem %s3, %s1267
      $region60: #{encoder_forward.2} parent=51 // pred_fallthru
        _
      // Predicated region
      $region61: #{encoder_forward.2} parent=51 // pred_check
        %p1269 = pneg %p172
      $region62: #{encoder_forward.2} parent=51 // pred_check_branch
        %1271 = sbr.rel (%p1269) target = $region64
      $region63: #{encoder_forward.2} parent=51 // pred_region
        %p1272 = scmp.lt.s32.totalorder %s22, 1
        %s1273 = scalar_select %p1272, %s22, 1
        %s1274 = smul.addr %s1273, 2
        %s1275 = scalar_lea.vmem %s4, %s1274
      $region64: #{encoder_forward.2} parent=51 // pred_fallthru
        _
    $region52: #{encoder_forward.2} parent=5 // pred_fallthru
      _
  $region6: #{encoder_forward.2} parent=0 // loop_footer
    %s15 = sadd.s32 1, %s11
  $region7: #{encoder_forward.2} parent=0 // loop_footer_branch
    %10 = sbr.rel target = $region3
  $region8: #{encoder_forward.2} parent=0 // loop_exit
    _

</llo_original>
